<compile_context>
chip_gen: v7x
topology: tpu7x:2x2x1
jax: 0.10.0
libtpu: 0.0.40
codegen_flags: <defaults>
</compile_context>

<pallas_src>
import numpy as np
import jax
import jax.numpy as jnp
from jax import lax
from jax.experimental import pallas as pl
from jax.experimental.pallas import tpu as pltpu

# ----------------------------- config (DictConfig stand-in) -------------------
Z_DIM = 16           # cfg.motion.z_dim
C_DIM = 8            # cfg.c_dim
V_DIM = 32           # cfg.motion.v_dim
KSIZE = 2            # cfg.motion.kernel_size
MOTION_Z_DIST = 16   # cfg.motion.motion_z_distance
MAX_NUM_FRAMES = 32  # cfg.sampling.max_num_frames
NUM_FREQS = 16       # cfg.time_enc.dim
MIN_PERIOD = 16      # cfg.time_enc.min_period_len
MAX_PERIOD = 1024    # cfg.time_enc.max_period_len
CONV_LR_MULT = 0.01  # lr_multiplier in EqLRConv1d
LRELU_GAIN = float(np.sqrt(2.0))


def _rep_spec(shape):
    """Full-array block replicated across the batch grid."""
    zeros = (0,) * len(shape)
    return pl.BlockSpec(shape, lambda b, z=zeros: z)


# ----------------------------- fused forward kernel ---------------------------
def _motion_mapping_kernel(t_ref, mz_ref, c_ref,
                           w1s_ref, w1c_ref, b1_ref,
                           w2s_ref, b2_ref, wcomb_ref,
                           freqs_ref, scales_ref, o_ref):
    # t_ref:   [NF, 1]      frame times of this batch element
    # mz_ref:  [L0, Z]      motion noise trajectory
    # c_ref:   [1, C]       conditioning vector
    # w1s_ref: [Z, K*ZO]    conv1 tap-stacked weights for the motion_z channels
    # w1c_ref: [C, ZO]      conv1 weights for the (position-constant) c channels, summed over taps
    # w2s_ref: [ZO, K*V]    conv2 tap-stacked weights (layer-1 lrelu gain folded in)
    # wcomb_ref: [V, 4F]    [periods | phases | aligners] predictor weights (layer-2 gain folded in)
    NF = t_ref.shape[0]
    L0 = mz_ref.shape[0]
    ZO = b1_ref.shape[1]
    VD = b2_ref.shape[1]
    NQ = freqs_ref.shape[1]
    K1 = w1s_ref.shape[1] // ZO
    K2 = w2s_ref.shape[1] // VD
    L1 = L0 - (K1 - 1)
    L2 = L1 - (K2 - 1)

    # ---- conv1: one MXU pass; shifted-tap sum via static slices ----
    y1 = jnp.dot(mz_ref[...], w1s_ref[...], preferred_element_type=jnp.float32)   # [L0, K1*ZO]
    const1 = jnp.dot(c_ref[...], w1c_ref[...],
                     preferred_element_type=jnp.float32) + b1_ref[...]             # [1, ZO]
    acc1 = y1[0:L1, 0:ZO]
    for k in range(1, K1):  # static unroll (K1 == 2)
        acc1 = acc1 + y1[k:k + L1, k * ZO:(k + 1) * ZO]
    h = acc1 + const1
    h = jnp.where(h >= 0.0, h, 0.2 * h)            # F.leaky_relu(.,0.2); sqrt(2) folded into w2s

    # ---- conv2: one MXU pass ----
    y2 = jnp.dot(h, w2s_ref[...], preferred_element_type=jnp.float32)              # [L1, K2*VD]
    acc2 = y2[0:L2, 0:VD]
    for k in range(1, K2):
        acc2 = acc2 + y2[k:k + L2, k * VD:(k + 1) * VD]
    trajs = acc2 + b2_ref[...]
    trajs = jnp.where(trajs >= 0.0, trajs, 0.2 * trajs)   # sqrt(2) folded into wcomb

    # ---- predictors applied once to all trajectory codes, then one-hot row gather ----
    proj = jnp.dot(trajs, wcomb_ref[...], preferred_element_type=jnp.float32)      # [L2, 4*NQ]

    tt = t_ref[...]                                           # [NF, 1]
    li = jnp.floor(tt * (1.0 / MOTION_Z_DIST))                # left code index (float)
    t_left = li * float(MOTION_Z_DIST)                        # t - t % dist
    t_right = t_left + float(MOTION_Z_DIST)
    w = (tt - t_left) * (1.0 / MOTION_Z_DIST)                 # interp weights
    omw = 1.0 - w

    col = lax.broadcasted_iota(jnp.int32, (NF, L2), 1)
    li_i = li.astype(jnp.int32)
    sel_l = (col == li_i).astype(jnp.float32)                 # one-hot row selectors
    sel_r = (col == (li_i + 1)).astype(jnp.float32)
    heads_l = jnp.dot(sel_l, proj, preferred_element_type=jnp.float32)  # [NF, 4*NQ]
    heads_r = jnp.dot(sel_r, proj, preferred_element_type=jnp.float32)

    periods = jnp.tanh(heads_l[:, 0:NQ]) + 1.0                # [NF, NQ]
    base = periods * freqs_ref[...]
    phase_off = heads_l[:, NQ:2 * NQ] * scales_ref[...]

    raw = base * tt + phase_off
    raw_l = base * t_left + phase_off
    raw_r = base * t_right + phase_off

    sin_emb = jnp.sin(raw) - (jnp.sin(raw_l) * omw + jnp.sin(raw_r) * w)
    cos_emb = jnp.cos(raw) - (jnp.cos(raw_l) * omw + jnp.cos(raw_r) * w)
    al_sin = heads_l[:, 2 * NQ:3 * NQ] * omw + heads_r[:, 2 * NQ:3 * NQ] * w
    al_cos = heads_l[:, 3 * NQ:4 * NQ] * omw + heads_r[:, 3 * NQ:4 * NQ] * w

    # write halves in place -- no lane-axis concat
    o_ref[:, 0:NQ] = sin_emb + al_sin
    o_ref[:, NQ:2 * NQ] = cos_emb + al_cos


# ----------------------------- parameters -------------------------------------
def init_params(key):
    ks = jax.random.split(key, 5)
    cin1 = Z_DIM + C_DIM
    K = KSIZE

    # EqLRConv1d: raw weight ~ N(0,1)/lr_mult; effective = raw * lr_mult / sqrt(fan_in)
    w1_raw = jax.random.normal(ks[0], (Z_DIM, cin1, K), jnp.float32) / CONV_LR_MULT
    w1_eff = w1_raw * (CONV_LR_MULT / np.sqrt(cin1 * K))      # [out, in, K]
    w1_t = jnp.transpose(w1_eff, (2, 1, 0))                   # [K, in, out]
    w1s = jnp.concatenate([w1_t[k, :Z_DIM] for k in range(K)], axis=1)   # [Z, K*Z]
    w1c = sum(w1_t[k, Z_DIM:] for k in range(K))                         # [C, Z]
    b1 = jnp.zeros((1, Z_DIM), jnp.float32)                   # bias_init=0 * bias_gain

    w2_raw = jax.random.normal(ks[1], (V_DIM, Z_DIM, K), jnp.float32) / CONV_LR_MULT
    w2_eff = w2_raw * (CONV_LR_MULT / np.sqrt(Z_DIM * K))
    w2_t = jnp.transpose(w2_eff, (2, 1, 0))                   # [K, Z, V]
    # layer-1 lrelu gain sqrt(2) folded into layer-2 weights (exact: post-act scalar * linear)
    w2s = jnp.concatenate([w2_t[k] for k in range(K)], axis=1) * LRELU_GAIN   # [Z, K*V]
    b2 = jnp.zeros((1, V_DIM), jnp.float32)

    # FullyConnectedLayer (lr_mult=1, bias=False): effective weight = N(0,1)/sqrt(in); pre-transposed
    fc_gain = 1.0 / np.sqrt(V_DIM)
    wp = (jax.random.normal(ks[2], (NUM_FREQS, V_DIM), jnp.float32) * fc_gain).T
    wph = (jax.random.normal(ks[3], (NUM_FREQS, V_DIM), jnp.float32) * fc_gain).T
    wa = (jax.random.normal(ks[4], (2 * NUM_FREQS, V_DIM), jnp.float32) * fc_gain).T
    # layer-2 lrelu gain folded into the (linear, bias-free) predictor weights
    wcomb = jnp.concatenate([wp, wph, wa], axis=1) * LRELU_GAIN           # [V, 4*F]

    # buffers: construct_linspaced_frequencies + phase_scales
    freqs_np = 2.0 * np.pi / 2.0 ** np.linspace(np.log2(MIN_PERIOD),
                                                np.log2(MAX_PERIOD), NUM_FREQS)
    freqs_np = freqs_np[::-1].copy().astype(np.float32)[None, :]          # [1, F]
    period_lens = 2.0 * np.pi / freqs_np
    phase_scales_np = (MAX_PERIOD / period_lens).astype(np.float32)

    return dict(w1s=w1s, w1c=w1c, b1=b1, w2s=w2s, b2=b2, wcomb=wcomb,
                freqs=jnp.asarray(freqs_np),
                phase_scales=jnp.asarray(phase_scales_np))


# ----------------------------- forward -----------------------------------------
def motion_mapping_forward(params, c, t, motion_z):
    """c: [B, c_dim], t: [B, F] float frame indices, motion_z: [B, max_traj_len, z_dim]."""
    B, NF = t.shape
    L0 = motion_z.shape[1]
    assert NF % 8 == 0, "num_frames must be a multiple of 8 for the (8,128) output tiling"

    t3 = t.astype(jnp.float32)[:, :, None]          # [B, NF, 1]  (time along sublanes)
    c3 = c.astype(jnp.float32)[:, None, :]          # [B, 1, C]

    motion_v = pl.pallas_call(
        _motion_mapping_kernel,
        out_shape=jax.ShapeDtypeStruct((B * NF, 2 * NUM_FREQS), jnp.float32),
        grid=(B,),
        in_specs=[
            pl.BlockSpec((None, NF, 1), lambda b: (b, 0, 0)),
            pl.BlockSpec((None, L0, Z_DIM), lambda b: (b, 0, 0)),
            pl.BlockSpec((None, 1, C_DIM), lambda b: (b, 0, 0)),
            _rep_spec(params['w1s'].shape),
            _rep_spec(params['w1c'].shape),
            _rep_spec(params['b1'].shape),
            _rep_spec(params['w2s'].shape),
            _rep_spec(params['b2'].shape),
            _rep_spec(params['wcomb'].shape),
            _rep_spec(params['freqs'].shape),
            _rep_spec(params['phase_scales'].shape),
        ],
        out_specs=pl.BlockSpec((NF, 2 * NUM_FREQS), lambda b: (b, 0)),
        compiler_params=pltpu.CompilerParams(dimension_semantics=("parallel",)),
    )(t3, motion_z.astype(jnp.float32), c3,
      params['w1s'], params['w1c'], params['b1'],
      params['w2s'], params['b2'], params['wcomb'],
      params['freqs'], params['phase_scales'])

    return {'motion_v': motion_v, 'motion_z': motion_z}


# ----------------------------- main ---------------------------------------------
if __name__ == "__main__":
    key = jax.random.PRNGKey(0)
    kp, kc, kt, kz = jax.random.split(key, 4)
    params = init_params(kp)

    B, F = 2, 8
    c = jax.random.normal(kc, (B, C_DIM), jnp.float32)
    t = jax.random.randint(kt, (B, F), 0, MAX_NUM_FRAMES).astype(jnp.float32)

    # get_max_traj_len is shape-determining -> computed host-side from concrete t (static),
    # exactly as in the PyTorch module.  TODO(synk): under jax.jit of t this must come
    # from MAX_NUM_FRAMES alone.
    t_np = np.asarray(t)
    max_t = max(MAX_NUM_FRAMES - 1, float(t_np.max()))
    num_additional_codes = (KSIZE - 1) * 2
    max_traj_len = int(np.ceil(max_t / MOTION_Z_DIST)) + 2 + num_additional_codes
    motion_z = jax.random.normal(kz, (B, max_traj_len, Z_DIM), jnp.float32)

    out = motion_mapping_forward(params, c, t, motion_z)
    jax.block_until_ready(out['motion_v'])
    assert out['motion_v'].shape == (B * F, 2 * NUM_FREQS)
    print("KERNEL_OK")
</pallas_src>

<mosaic_0001>
module attributes {stable_mosaic.version = 11 : i64} {
  func.func @_motion_mapping_kernel(%arg0: i32, %arg1: memref<1x8x1xf32, #tpu.memory_space<vmem>>, %arg2: memref<1x6x16xf32, #tpu.memory_space<vmem>>, %arg3: memref<1x1x8xf32, #tpu.memory_space<vmem>>, %arg4: memref<16x32xf32, #tpu.memory_space<vmem>>, %arg5: memref<8x16xf32, #tpu.memory_space<vmem>>, %arg6: memref<1x16xf32, #tpu.memory_space<vmem>>, %arg7: memref<16x64xf32, #tpu.memory_space<vmem>>, %arg8: memref<1x32xf32, #tpu.memory_space<vmem>>, %arg9: memref<32x64xf32, #tpu.memory_space<vmem>>, %arg10: memref<1x16xf32, #tpu.memory_space<vmem>>, %arg11: memref<1x16xf32, #tpu.memory_space<vmem>>, %arg12: memref<8x32xf32, #tpu.memory_space<vmem>>) attributes {dimension_semantics = [#tpu.dimension_semantics<parallel>], iteration_bounds = array<i64: 2>, scalar_prefetch = 0 : i64, scratch_operands = 0 : i64, tpu.core_type = #tpu.core_type<tc>, window_params = [{transform_indices = @transform_0, window_bounds = array<i64: 1, 8, 1>}, {transform_indices = @transform_1, window_bounds = array<i64: 1, 6, 16>}, {transform_indices = @transform_2, window_bounds = array<i64: 1, 1, 8>}, {pipeline_mode = #tpu.pipeline_mode<synchronous>, transform_indices = @transform_3, window_bounds = array<i64: 16, 32>}, {pipeline_mode = #tpu.pipeline_mode<synchronous>, transform_indices = @transform_4, window_bounds = array<i64: 8, 16>}, {pipeline_mode = #tpu.pipeline_mode<synchronous>, transform_indices = @transform_5, window_bounds = array<i64: 1, 16>}, {pipeline_mode = #tpu.pipeline_mode<synchronous>, transform_indices = @transform_6, window_bounds = array<i64: 16, 64>}, {pipeline_mode = #tpu.pipeline_mode<synchronous>, transform_indices = @transform_7, window_bounds = array<i64: 1, 32>}, {pipeline_mode = #tpu.pipeline_mode<synchronous>, transform_indices = @transform_8, window_bounds = array<i64: 32, 64>}, {pipeline_mode = #tpu.pipeline_mode<synchronous>, transform_indices = @transform_9, window_bounds = array<i64: 1, 16>}, {pipeline_mode = #tpu.pipeline_mode<synchronous>, transform_indices = @transform_10, window_bounds = array<i64: 1, 16>}, {transform_indices = @transform_11, window_bounds = array<i64: 8, 32>}]} {
    %c0 = arith.constant 0 : index
    %c0_0 = arith.constant 0 : index
    %c0_1 = arith.constant 0 : index
    %0 = vector.load %arg2[%c0, %c0_0, %c0_1] : memref<1x6x16xf32, #tpu.memory_space<vmem>>, vector<1x6x16xf32>
    %1 = vector.shape_cast %0 : vector<1x6x16xf32> to vector<6x16xf32>
    %c0_2 = arith.constant 0 : index
    %c0_3 = arith.constant 0 : index
    %2 = vector.load %arg4[%c0_2, %c0_3] : memref<16x32xf32, #tpu.memory_space<vmem>>, vector<16x32xf32>
    %cst = arith.constant dense<0.000000e+00> : vector<6x32xf32>
    %3 = tpu.matmul %1, %2, %cst {dimension_numbers = #tpu.dot_dimension_numbers<[1], [0], [0], [1], [0, 0, 1, 1], [], []>} : vector<6x16xf32>, vector<16x32xf32>, vector<6x32xf32> -> vector<6x32xf32>
    %c0_4 = arith.constant 0 : index
    %c0_5 = arith.constant 0 : index
    %c0_6 = arith.constant 0 : index
    %4 = vector.load %arg3[%c0_4, %c0_5, %c0_6] : memref<1x1x8xf32, #tpu.memory_space<vmem>>, vector<1x1x8xf32>
    %5 = vector.shape_cast %4 : vector<1x1x8xf32> to vector<1x8xf32>
    %c0_7 = arith.constant 0 : index
    %c0_8 = arith.constant 0 : index
    %6 = vector.load %arg5[%c0_7, %c0_8] : memref<8x16xf32, #tpu.memory_space<vmem>>, vector<8x16xf32>
    %cst_9 = arith.constant dense<0.000000e+00> : vector<1x16xf32>
    %7 = tpu.matmul %5, %6, %cst_9 {dimension_numbers = #tpu.dot_dimension_numbers<[1], [0], [0], [1], [0, 0, 1, 1], [], []>} : vector<1x8xf32>, vector<8x16xf32>, vector<1x16xf32> -> vector<1x16xf32>
    %c0_10 = arith.constant 0 : index
    %c0_11 = arith.constant 0 : index
    %8 = vector.load %arg6[%c0_10, %c0_11] : memref<1x16xf32, #tpu.memory_space<vmem>>, vector<1x16xf32>
    %9 = arith.addf %7, %8 : vector<1x16xf32>
    %10 = vector.extract_strided_slice %3 {offsets = [0, 0], sizes = [5, 16], strides = [1, 1]} : vector<6x32xf32> to vector<5x16xf32>
    %11 = vector.extract_strided_slice %3 {offsets = [1, 16], sizes = [5, 16], strides = [1, 1]} : vector<6x32xf32> to vector<5x16xf32>
    %12 = arith.addf %10, %11 : vector<5x16xf32>
    %13 = vector.broadcast %9 : vector<1x16xf32> to vector<5x16xf32>
    %14 = arith.addf %12, %13 : vector<5x16xf32>
    %cst_12 = arith.constant 0.000000e+00 : f32
    %15 = vector.broadcast %cst_12 : f32 to vector<5x16xf32>
    %16 = arith.cmpf oge, %14, %15 : vector<5x16xf32>
    %cst_13 = arith.constant 2.000000e-01 : f32
    %17 = vector.broadcast %cst_13 : f32 to vector<5x16xf32>
    %18 = arith.mulf %17, %14 : vector<5x16xf32>
    %19 = arith.select %16, %14, %18 : vector<5x16xi1>, vector<5x16xf32>
    %c0_14 = arith.constant 0 : index
    %c0_15 = arith.constant 0 : index
    %20 = vector.load %arg7[%c0_14, %c0_15] : memref<16x64xf32, #tpu.memory_space<vmem>>, vector<16x64xf32>
    %cst_16 = arith.constant dense<0.000000e+00> : vector<5x64xf32>
    %21 = tpu.matmul %19, %20, %cst_16 {dimension_numbers = #tpu.dot_dimension_numbers<[1], [0], [0], [1], [0, 0, 1, 1], [], []>} : vector<5x16xf32>, vector<16x64xf32>, vector<5x64xf32> -> vector<5x64xf32>
    %22 = vector.extract_strided_slice %21 {offsets = [0, 0], sizes = [4, 32], strides = [1, 1]} : vector<5x64xf32> to vector<4x32xf32>
    %23 = vector.extract_strided_slice %21 {offsets = [1, 32], sizes = [4, 32], strides = [1, 1]} : vector<5x64xf32> to vector<4x32xf32>
    %24 = arith.addf %22, %23 : vector<4x32xf32>
    %c0_17 = arith.constant 0 : index
    %c0_18 = arith.constant 0 : index
    %25 = vector.load %arg8[%c0_17, %c0_18] : memref<1x32xf32, #tpu.memory_space<vmem>>, vector<1x32xf32>
    %26 = vector.broadcast %25 : vector<1x32xf32> to vector<4x32xf32>
    %27 = arith.addf %24, %26 : vector<4x32xf32>
    %cst_19 = arith.constant 0.000000e+00 : f32
    %28 = vector.broadcast %cst_19 : f32 to vector<4x32xf32>
    %29 = arith.cmpf oge, %27, %28 : vector<4x32xf32>
    %cst_20 = arith.constant 2.000000e-01 : f32
    %30 = vector.broadcast %cst_20 : f32 to vector<4x32xf32>
    %31 = arith.mulf %30, %27 : vector<4x32xf32>
    %32 = arith.select %29, %27, %31 : vector<4x32xi1>, vector<4x32xf32>
    %c0_21 = arith.constant 0 : index
    %c0_22 = arith.constant 0 : index
    %33 = vector.load %arg9[%c0_21, %c0_22] : memref<32x64xf32, #tpu.memory_space<vmem>>, vector<32x64xf32>
    %cst_23 = arith.constant dense<0.000000e+00> : vector<4x64xf32>
    %34 = tpu.matmul %32, %33, %cst_23 {dimension_numbers = #tpu.dot_dimension_numbers<[1], [0], [0], [1], [0, 0, 1, 1], [], []>} : vector<4x32xf32>, vector<32x64xf32>, vector<4x64xf32> -> vector<4x64xf32>
    %c0_24 = arith.constant 0 : index
    %c0_25 = arith.constant 0 : index
    %c0_26 = arith.constant 0 : index
    %35 = vector.load %arg1[%c0_24, %c0_25, %c0_26] : memref<1x8x1xf32, #tpu.memory_space<vmem>>, vector<1x8x1xf32>
    %36 = vector.shape_cast %35 : vector<1x8x1xf32> to vector<8x1xf32>
    %cst_27 = arith.constant 6.250000e-02 : f32
    %37 = vector.broadcast %cst_27 : f32 to vector<8x1xf32>
    %38 = arith.mulf %36, %37 : vector<8x1xf32>
    %39 = math.floor %38 : vector<8x1xf32>
    %cst_28 = arith.constant 1.600000e+01 : f32
    %40 = vector.broadcast %cst_28 : f32 to vector<8x1xf32>
    %41 = arith.mulf %39, %40 : vector<8x1xf32>
    %cst_29 = arith.constant 1.600000e+01 : f32
    %42 = vector.broadcast %cst_29 : f32 to vector<8x1xf32>
    %43 = arith.addf %41, %42 : vector<8x1xf32>
    %44 = arith.subf %36, %41 : vector<8x1xf32>
    %cst_30 = arith.constant 6.250000e-02 : f32
    %45 = vector.broadcast %cst_30 : f32 to vector<8x1xf32>
    %46 = arith.mulf %44, %45 : vector<8x1xf32>
    %cst_31 = arith.constant 1.000000e+00 : f32
    %47 = vector.broadcast %cst_31 : f32 to vector<8x1xf32>
    %48 = arith.subf %47, %46 : vector<8x1xf32>
    %49 = tpu.iota {dimensions = array<i32: 1>} : vector<8x4xi32>
    %50 = arith.fptosi %39 : vector<8x1xf32> to vector<8x1xi32>
    %51 = vector.broadcast %50 : vector<8x1xi32> to vector<8x4xi32>
    %52 = arith.cmpi eq, %49, %51 : vector<8x4xi32>
    %53 = arith.extui %52 : vector<8x4xi1> to vector<8x4xi32>
    %54 = arith.sitofp %53 : vector<8x4xi32> to vector<8x4xf32>
    %c1_i32 = arith.constant 1 : i32
    %55 = vector.broadcast %c1_i32 : i32 to vector<8x1xi32>
    %56 = arith.addi %50, %55 : vector<8x1xi32>
    %57 = vector.broadcast %56 : vector<8x1xi32> to vector<8x4xi32>
    %58 = arith.cmpi eq, %49, %57 : vector<8x4xi32>
    %59 = arith.extui %58 : vector<8x4xi1> to vector<8x4xi32>
    %60 = arith.sitofp %59 : vector<8x4xi32> to vector<8x4xf32>
    %cst_32 = arith.constant dense<0.000000e+00> : vector<8x64xf32>
    %61 = tpu.matmul %54, %34, %cst_32 {dimension_numbers = #tpu.dot_dimension_numbers<[1], [0], [0], [1], [0, 0, 1, 1], [], []>} : vector<8x4xf32>, vector<4x64xf32>, vector<8x64xf32> -> vector<8x64xf32>
    %cst_33 = arith.constant dense<0.000000e+00> : vector<8x64xf32>
    %62 = tpu.matmul %60, %34, %cst_33 {dimension_numbers = #tpu.dot_dimension_numbers<[1], [0], [0], [1], [0, 0, 1, 1], [], []>} : vector<8x4xf32>, vector<4x64xf32>, vector<8x64xf32> -> vector<8x64xf32>
    %63 = vector.extract_strided_slice %61 {offsets = [0, 0], sizes = [8, 16], strides = [1, 1]} : vector<8x64xf32> to vector<8x16xf32>
    %64 = math.tanh %63 : vector<8x16xf32>
    %cst_34 = arith.constant 1.000000e+00 : f32
    %65 = vector.broadcast %cst_34 : f32 to vector<8x16xf32>
    %66 = arith.addf %64, %65 : vector<8x16xf32>
    %c0_35 = arith.constant 0 : index
    %c0_36 = arith.constant 0 : index
    %67 = vector.load %arg10[%c0_35, %c0_36] : memref<1x16xf32, #tpu.memory_space<vmem>>, vector<1x16xf32>
    %68 = vector.broadcast %67 : vector<1x16xf32> to vector<8x16xf32>
    %69 = arith.mulf %66, %68 : vector<8x16xf32>
    %70 = vector.extract_strided_slice %61 {offsets = [0, 16], sizes = [8, 16], strides = [1, 1]} : vector<8x64xf32> to vector<8x16xf32>
    %c0_37 = arith.constant 0 : index
    %c0_38 = arith.constant 0 : index
    %71 = vector.load %arg11[%c0_37, %c0_38] : memref<1x16xf32, #tpu.memory_space<vmem>>, vector<1x16xf32>
    %72 = vector.broadcast %71 : vector<1x16xf32> to vector<8x16xf32>
    %73 = arith.mulf %70, %72 : vector<8x16xf32>
    %74 = vector.broadcast %36 : vector<8x1xf32> to vector<8x16xf32>
    %75 = arith.mulf %69, %74 : vector<8x16xf32>
    %76 = arith.addf %75, %73 : vector<8x16xf32>
    %77 = vector.broadcast %41 : vector<8x1xf32> to vector<8x16xf32>
    %78 = arith.mulf %69, %77 : vector<8x16xf32>
    %79 = arith.addf %78, %73 : vector<8x16xf32>
    %80 = vector.broadcast %43 : vector<8x1xf32> to vector<8x16xf32>
    %81 = arith.mulf %69, %80 : vector<8x16xf32>
    %82 = arith.addf %81, %73 : vector<8x16xf32>
    %83 = math.sin %76 : vector<8x16xf32>
    %84 = math.sin %79 : vector<8x16xf32>
    %85 = vector.broadcast %48 : vector<8x1xf32> to vector<8x16xf32>
    %86 = arith.mulf %84, %85 : vector<8x16xf32>
    %87 = math.sin %82 : vector<8x16xf32>
    %88 = vector.broadcast %46 : vector<8x1xf32> to vector<8x16xf32>
    %89 = arith.mulf %87, %88 : vector<8x16xf32>
    %90 = arith.addf %86, %89 : vector<8x16xf32>
    %91 = arith.subf %83, %90 : vector<8x16xf32>
    %92 = math.cos %76 : vector<8x16xf32>
    %93 = math.cos %79 : vector<8x16xf32>
    %94 = vector.broadcast %48 : vector<8x1xf32> to vector<8x16xf32>
    %95 = arith.mulf %93, %94 : vector<8x16xf32>
    %96 = math.cos %82 : vector<8x16xf32>
    %97 = vector.broadcast %46 : vector<8x1xf32> to vector<8x16xf32>
    %98 = arith.mulf %96, %97 : vector<8x16xf32>
    %99 = arith.addf %95, %98 : vector<8x16xf32>
    %100 = arith.subf %92, %99 : vector<8x16xf32>
    %101 = vector.extract_strided_slice %61 {offsets = [0, 32], sizes = [8, 16], strides = [1, 1]} : vector<8x64xf32> to vector<8x16xf32>
    %102 = vector.broadcast %48 : vector<8x1xf32> to vector<8x16xf32>
    %103 = arith.mulf %101, %102 : vector<8x16xf32>
    %104 = vector.extract_strided_slice %62 {offsets = [0, 32], sizes = [8, 16], strides = [1, 1]} : vector<8x64xf32> to vector<8x16xf32>
    %105 = vector.broadcast %46 : vector<8x1xf32> to vector<8x16xf32>
    %106 = arith.mulf %104, %105 : vector<8x16xf32>
    %107 = arith.addf %103, %106 : vector<8x16xf32>
    %108 = vector.extract_strided_slice %61 {offsets = [0, 48], sizes = [8, 16], strides = [1, 1]} : vector<8x64xf32> to vector<8x16xf32>
    %109 = vector.broadcast %48 : vector<8x1xf32> to vector<8x16xf32>
    %110 = arith.mulf %108, %109 : vector<8x16xf32>
    %111 = vector.extract_strided_slice %62 {offsets = [0, 48], sizes = [8, 16], strides = [1, 1]} : vector<8x64xf32> to vector<8x16xf32>
    %112 = vector.broadcast %46 : vector<8x1xf32> to vector<8x16xf32>
    %113 = arith.mulf %111, %112 : vector<8x16xf32>
    %114 = arith.addf %110, %113 : vector<8x16xf32>
    %115 = arith.addf %91, %107 : vector<8x16xf32>
    %c0_39 = arith.constant 0 : index
    %c0_40 = arith.constant 0 : index
    %116 = vector.load %arg12[%c0_39, %c0_40] : memref<8x32xf32, #tpu.memory_space<vmem>>, vector<8x16xf32>
    tpu.vector_store %arg12[%c0_39, %c0_40], %115 {strides = array<i32>} : memref<8x32xf32, #tpu.memory_space<vmem>>, vector<8x16xf32>,
    %117 = arith.addf %100, %114 : vector<8x16xf32>
    %c0_41 = arith.constant 0 : index
    %c16 = arith.constant 16 : index
    %118 = vector.load %arg12[%c0_41, %c16] : memref<8x32xf32, #tpu.memory_space<vmem>>, vector<8x16xf32>
    tpu.vector_store %arg12[%c0_41, %c16], %117 {strides = array<i32>} : memref<8x32xf32, #tpu.memory_space<vmem>>, vector<8x16xf32>,
    return
  }
  func.func @transform_0(%arg0: i32) -> (i32, i32, i32) {
    %c0_i32 = arith.constant 0 : i32
    %c0_i32_0 = arith.constant 0 : i32
    %c0_i32_1 = arith.constant 0 : i32
    return %arg0, %c0_i32, %c0_i32_0 : i32, i32, i32
  }
  func.func @transform_1(%arg0: i32) -> (i32, i32, i32) {
    %c0_i32 = arith.constant 0 : i32
    %c0_i32_0 = arith.constant 0 : i32
    %c0_i32_1 = arith.constant 0 : i32
    return %arg0, %c0_i32, %c0_i32_0 : i32, i32, i32
  }
  func.func @transform_2(%arg0: i32) -> (i32, i32, i32) {
    %c0_i32 = arith.constant 0 : i32
    %c0_i32_0 = arith.constant 0 : i32
    %c0_i32_1 = arith.constant 0 : i32
    return %arg0, %c0_i32, %c0_i32_0 : i32, i32, i32
  }
  func.func @transform_3(%arg0: i32) -> (i32, i32) {
    %c0_i32 = arith.constant 0 : i32
    %c0_i32_0 = arith.constant 0 : i32
    %c0_i32_1 = arith.constant 0 : i32
    return %c0_i32, %c0_i32_0 : i32, i32
  }
  func.func @transform_4(%arg0: i32) -> (i32, i32) {
    %c0_i32 = arith.constant 0 : i32
    %c0_i32_0 = arith.constant 0 : i32
    %c0_i32_1 = arith.constant 0 : i32
    return %c0_i32, %c0_i32_0 : i32, i32
  }
  func.func @transform_5(%arg0: i32) -> (i32, i32) {
    %c0_i32 = arith.constant 0 : i32
    %c0_i32_0 = arith.constant 0 : i32
    %c0_i32_1 = arith.constant 0 : i32
    return %c0_i32, %c0_i32_0 : i32, i32
  }
  func.func @transform_6(%arg0: i32) -> (i32, i32) {
    %c0_i32 = arith.constant 0 : i32
    %c0_i32_0 = arith.constant 0 : i32
    %c0_i32_1 = arith.constant 0 : i32
    return %c0_i32, %c0_i32_0 : i32, i32
  }
  func.func @transform_7(%arg0: i32) -> (i32, i32) {
    %c0_i32 = arith.constant 0 : i32
    %c0_i32_0 = arith.constant 0 : i32
    %c0_i32_1 = arith.constant 0 : i32
    return %c0_i32, %c0_i32_0 : i32, i32
  }
  func.func @transform_8(%arg0: i32) -> (i32, i32) {
    %c0_i32 = arith.constant 0 : i32
    %c0_i32_0 = arith.constant 0 : i32
    %c0_i32_1 = arith.constant 0 : i32
    return %c0_i32, %c0_i32_0 : i32, i32
  }
  func.func @transform_9(%arg0: i32) -> (i32, i32) {
    %c0_i32 = arith.constant 0 : i32
    %c0_i32_0 = arith.constant 0 : i32
    %c0_i32_1 = arith.constant 0 : i32
    return %c0_i32, %c0_i32_0 : i32, i32
  }
  func.func @transform_10(%arg0: i32) -> (i32, i32) {
    %c0_i32 = arith.constant 0 : i32
    %c0_i32_0 = arith.constant 0 : i32
    %c0_i32_1 = arith.constant 0 : i32
    return %c0_i32, %c0_i32_0 : i32, i32
  }
  func.func @transform_11(%arg0: i32) -> (i32, i32) {
    %c0_i32 = arith.constant 0 : i32
    %c0_i32_0 = arith.constant 0 : i32
    return %arg0, %c0_i32 : i32, i32
  }
}

</mosaic_0001>

<llo_original>
// kernel: tpu_custom_call.1
$region0: #{tpu_custom_call.1}
  #allocation0 [shape = 'u32[]', space=smem, size = 0x4, offset = 0x4, fixed_abs, tag = 'smem constant byte address 0x4 - core index']
  #allocation1 [shape = 'u32[144,128]{1,0:T(1,128)}', space=vmem, size = 0x12000, scoped, tag = 'internal scratch']
  %s0 = inlined_call_operand.vmem [shape: f32[2,8,1], index: 0, kind: input, shape index: {}]
  %s1 = inlined_call_operand.vmem [shape: f32[2,6,16], index: 1, kind: input, shape index: {}]
  %s2 = inlined_call_operand.hbm [shape: f32[2,1,8], index: 2, kind: input, shape index: {}]
  %s3 = inlined_call_operand.vmem [shape: f32[16,32], index: 3, kind: input, shape index: {}]
  %s4 = inlined_call_operand.hbm [shape: f32[8,16], index: 4, kind: input, shape index: {}]
  %s5 = inlined_call_operand.hbm [shape: f32[1,16], index: 5, kind: input, shape index: {}]
  %s6 = inlined_call_operand.vmem [shape: f32[16,64], index: 6, kind: input, shape index: {}]
  %s7 = inlined_call_operand.vmem [shape: f32[1,32], index: 7, kind: input, shape index: {}]
  %s8 = inlined_call_operand.vmem [shape: f32[32,64], index: 8, kind: input, shape index: {}]
  %s9 = inlined_call_operand.vmem [shape: f32[1,16], index: 9, kind: input, shape index: {}]
  %s10 = inlined_call_operand.vmem [shape: f32[1,16], index: 10, kind: input, shape index: {}]
  %s11 = inlined_call_operand.hbm [shape: f32[16,32], index: 11, kind: output, shape index: {}]
  %s12 = sld [smem:[#allocation0]]
  $region89: #{tpu_custom_call.1} parent=0
    _
  %s14 = ssub.s32 1, %s12
  %s15 = scalar_select 0, %s14, %s12
  $region1: #{tpu_custom_call.1} parent=0
    #allocation2 [shape = 'u8[1024]{0}', space=vmem, size = 0x400, scoped, tag = 'input window, operand 2']
    #allocation3 [shape = 's32[2]{0}', space=sflag, size = 0x8, scoped, tag = 'scoped memory for tpu_custom_call.1']
    #allocation4 [shape = 's32[2]{0}', space=sflag, size = 0x8, scoped, tag = 'scoped memory for tpu_custom_call.1']
    #allocation5 [shape = 'u8[4096]{0}', space=vmem, size = 0x1000, scoped, tag = 'input window, operand 4, single buffered']
    #allocation6 [shape = 's32[1]{0}', space=sflag, size = 0x4, scoped, tag = 'scoped memory for tpu_custom_call.1']
    #allocation7 [shape = 'u8[512]{0}', space=vmem, size = 0x400, scoped, tag = 'input window, operand 5, single buffered']
    #allocation8 [shape = 'u8[8192]{0}', space=vmem, size = 0x2000, scoped, tag = 'output window, operand 0']
    %16 = vsyncpa [#allocation3], 0
    %s17 = scalar_lea.sflag [#allocation3], 1
    %18 = vsyncpa %s17, 0
    %19 = vsyncpa [#allocation6], 0
    %20 = vsyncpa [#allocation4], 0
    %s21 = scalar_lea.sflag [#allocation4], 1
    %22 = vsyncpa %s21, 0
    loop: start=0, step=1, limit=4
    $region2: #{tpu_custom_call.1} parent=1 // loop_pre_header
      _
    $region3: #{tpu_custom_call.1} parent=1 // loop_header
      %s24 = sphi 0, %s28
      %p25 = scmp.ge.s32.totalorder %s24, 4
      %s34 = sphi 0, %s36
      %s37 = sphi 0, %s34
      %s38 = sphi 0, %s37
      %s54 = sphi 0, %s38
      %s60 = sphi 0, %s62
      %s63 = sphi 0, %s60
      %s64 = sphi 0, %s63
      %s80 = sphi 0, %s64
      %s86 = sphi 0, %s88
      %s89 = sphi 0, %s86
      %s90 = sphi 0, %s89
      %s106 = sphi 0, %s90
      %s110 = sphi 0, %s110
      %s112 = sphi 0, %s110
      %s113 = sphi 0, %s112
      %s127 = sphi 0, %s113
      %s131 = sphi 0, %s131
      %s133 = sphi 0, %s131
      %s134 = sphi 0, %s133
      %s148 = sphi 0, %s134
      %s152 = sphi 0, %s152
      %s154 = sphi 0, %s152
      %s155 = sphi 0, %s154
      %s169 = sphi 0, %s155
      %s173 = sphi 0, %s173
      %s175 = sphi 0, %s173
      %s176 = sphi 0, %s175
      %s190 = sphi 0, %s176
      %s194 = sphi 0, %s194
      %s196 = sphi 0, %s194
      %s197 = sphi 0, %s196
      %s211 = sphi 0, %s197
      %s215 = sphi 0, %s215
      %s217 = sphi 0, %s215
      %s218 = sphi 0, %s217
      %s232 = sphi 0, %s218
      %s236 = sphi 0, %s236
      %s238 = sphi 0, %s236
      %s239 = sphi 0, %s238
      %s253 = sphi 0, %s239
      %s257 = sphi 0, %s257
      %s259 = sphi 0, %s257
      %s260 = sphi 0, %s259
      %s274 = sphi 0, %s260
      %s280 = sphi 0, %s282
      %s283 = sphi 0, %s280
      %s284 = sphi 0, %s283
      %s300 = sphi 0, %s284
    $region4: #{tpu_custom_call.1} parent=1 // loop_header_branch
      %27 = sbr.rel (%p25) target = $region8
    $region5: #{tpu_custom_call.1} parent=1 // loop_body
      %s29 = ssub.s32 %s24, 1
      %s30 = ssub.s32 %s24, 2
      %s31 = sadd.s32 %s24, 1
      %s32 = ssub.s32 %s24, %s31
      %p33 = scmp.eq.s32.totalorder %s32, 0
      %s35 = sadd.s32 %s34, 1
      %s36 = scalar_select %p33, %s34, %s35
      %p39 = pneg %p33
      %p40 = scmp.eq.s32.totalorder %s24, 1
      %p41 = por %p39, %p40
      %p42 = scmp.ne.s32.totalorder %s34, %s37
      %p43 = scmp.eq.s32.totalorder %s24, 0
      %p44 = por %p42, %p43
      %p45 = scmp.ne.s32.totalorder %s34, %s37
      %p46 = scmp.eq.s32.totalorder %s29, 1
      %p47 = por %p45, %p46
      %p48 = scmp.ne.s32.totalorder %s37, %s38
      %p49 = scmp.eq.s32.totalorder %s29, 0
      %p50 = por %p48, %p49
      %p51 = scmp.ne.s32.totalorder %s37, %s38
      %p52 = scmp.eq.s32.totalorder %s30, 1
      %p53 = por %p51, %p52
      %p55 = scmp.ne.s32.totalorder %s38, %s54
      %p56 = scmp.eq.s32.totalorder %s30, 0
      %p57 = por %p55, %p56
      %s58 = ssub.s32 %s24, %s31
      %p59 = scmp.eq.s32.totalorder %s58, 0
      %s61 = sadd.s32 %s60, 1
      %s62 = scalar_select %p59, %s60, %s61
      %p65 = pneg %p59
      %p66 = scmp.eq.s32.totalorder %s24, 1
      %p67 = por %p65, %p66
      %p68 = scmp.ne.s32.totalorder %s60, %s63
      %p69 = scmp.eq.s32.totalorder %s24, 0
      %p70 = por %p68, %p69
      %p71 = scmp.ne.s32.totalorder %s60, %s63
      %p72 = scmp.eq.s32.totalorder %s29, 1
      %p73 = por %p71, %p72
      %p74 = scmp.ne.s32.totalorder %s63, %s64
      %p75 = scmp.eq.s32.totalorder %s29, 0
      %p76 = por %p74, %p75
      %p77 = scmp.ne.s32.totalorder %s63, %s64
      %p78 = scmp.eq.s32.totalorder %s30, 1
      %p79 = por %p77, %p78
      %p81 = scmp.ne.s32.totalorder %s64, %s80
      %p82 = scmp.eq.s32.totalorder %s30, 0
      %p83 = por %p81, %p82
      %s84 = ssub.s32 %s24, %s31
      %p85 = scmp.eq.s32.totalorder %s84, 0
      %s87 = sadd.s32 %s86, 1
      %s88 = scalar_select %p85, %s86, %s87
      %p91 = pneg %p85
      %p92 = scmp.eq.s32.totalorder %s24, 1
      %p93 = por %p91, %p92
      %p94 = scmp.ne.s32.totalorder %s86, %s89
      %p95 = scmp.eq.s32.totalorder %s24, 0
      %p96 = por %p94, %p95
      %p97 = scmp.ne.s32.totalorder %s86, %s89
      %p98 = scmp.eq.s32.totalorder %s29, 1
      %p99 = por %p97, %p98
      %p100 = scmp.ne.s32.totalorder %s89, %s90
      %p101 = scmp.eq.s32.totalorder %s29, 0
      %p102 = por %p100, %p101
      %p103 = scmp.ne.s32.totalorder %s89, %s90
      %p104 = scmp.eq.s32.totalorder %s30, 1
      %p105 = por %p103, %p104
      %p107 = scmp.ne.s32.totalorder %s90, %s106
      %p108 = scmp.eq.s32.totalorder %s30, 0
      %p109 = por %p107, %p108
      %s111 = sadd.s32 %s110, 1
      %p114 = scmp.eq.s32.totalorder %s24, 1
      %p115 = scmp.ne.s32.totalorder %s110, %s112
      %p116 = scmp.eq.s32.totalorder %s24, 0
      %p117 = por %p115, %p116
      %p118 = scmp.ne.s32.totalorder %s110, %s112
      %p119 = scmp.eq.s32.totalorder %s29, 1
      %p120 = por %p118, %p119
      %p121 = scmp.ne.s32.totalorder %s112, %s113
      %p122 = scmp.eq.s32.totalorder %s29, 0
      %p123 = por %p121, %p122
      %p124 = scmp.ne.s32.totalorder %s112, %s113
      %p125 = scmp.eq.s32.totalorder %s30, 1
      %p126 = por %p124, %p125
      %p128 = scmp.ne.s32.totalorder %s113, %s127
      %p129 = scmp.eq.s32.totalorder %s30, 0
      %p130 = por %p128, %p129
      %s132 = sadd.s32 %s131, 1
      %p135 = scmp.eq.s32.totalorder %s24, 1
      %p136 = scmp.ne.s32.totalorder %s131, %s133
      %p137 = scmp.eq.s32.totalorder %s24, 0
      %p138 = por %p136, %p137
      %p139 = scmp.ne.s32.totalorder %s131, %s133
      %p140 = scmp.eq.s32.totalorder %s29, 1
      %p141 = por %p139, %p140
      %p142 = scmp.ne.s32.totalorder %s133, %s134
      %p143 = scmp.eq.s32.totalorder %s29, 0
      %p144 = por %p142, %p143
      %p145 = scmp.ne.s32.totalorder %s133, %s134
      %p146 = scmp.eq.s32.totalorder %s30, 1
      %p147 = por %p145, %p146
      %p149 = scmp.ne.s32.totalorder %s134, %s148
      %p150 = scmp.eq.s32.totalorder %s30, 0
      %p151 = por %p149, %p150
      %s153 = sadd.s32 %s152, 1
      %p156 = scmp.eq.s32.totalorder %s24, 1
      %p157 = scmp.ne.s32.totalorder %s152, %s154
      %p158 = scmp.eq.s32.totalorder %s24, 0
      %p159 = por %p157, %p158
      %p160 = scmp.ne.s32.totalorder %s152, %s154
      %p161 = scmp.eq.s32.totalorder %s29, 1
      %p162 = por %p160, %p161
      %p163 = scmp.ne.s32.totalorder %s154, %s155
      %p164 = scmp.eq.s32.totalorder %s29, 0
      %p165 = por %p163, %p164
      %p166 = scmp.ne.s32.totalorder %s154, %s155
      %p167 = scmp.eq.s32.totalorder %s30, 1
      %p168 = por %p166, %p167
      %p170 = scmp.ne.s32.totalorder %s155, %s169
      %p171 = scmp.eq.s32.totalorder %s30, 0
      %p172 = por %p170, %p171
      %s174 = sadd.s32 %s173, 1
      %p177 = scmp.eq.s32.totalorder %s24, 1
      %p178 = scmp.ne.s32.totalorder %s173, %s175
      %p179 = scmp.eq.s32.totalorder %s24, 0
      %p180 = por %p178, %p179
      %p181 = scmp.ne.s32.totalorder %s173, %s175
      %p182 = scmp.eq.s32.totalorder %s29, 1
      %p183 = por %p181, %p182
      %p184 = scmp.ne.s32.totalorder %s175, %s176
      %p185 = scmp.eq.s32.totalorder %s29, 0
      %p186 = por %p184, %p185
      %p187 = scmp.ne.s32.totalorder %s175, %s176
      %p188 = scmp.eq.s32.totalorder %s30, 1
      %p189 = por %p187, %p188
      %p191 = scmp.ne.s32.totalorder %s176, %s190
      %p192 = scmp.eq.s32.totalorder %s30, 0
      %p193 = por %p191, %p192
      %s195 = sadd.s32 %s194, 1
      %p198 = scmp.eq.s32.totalorder %s24, 1
      %p199 = scmp.ne.s32.totalorder %s194, %s196
      %p200 = scmp.eq.s32.totalorder %s24, 0
      %p201 = por %p199, %p200
      %p202 = scmp.ne.s32.totalorder %s194, %s196
      %p203 = scmp.eq.s32.totalorder %s29, 1
      %p204 = por %p202, %p203
      %p205 = scmp.ne.s32.totalorder %s196, %s197
      %p206 = scmp.eq.s32.totalorder %s29, 0
      %p207 = por %p205, %p206
      %p208 = scmp.ne.s32.totalorder %s196, %s197
      %p209 = scmp.eq.s32.totalorder %s30, 1
      %p210 = por %p208, %p209
      %p212 = scmp.ne.s32.totalorder %s197, %s211
      %p213 = scmp.eq.s32.totalorder %s30, 0
      %p214 = por %p212, %p213
      %s216 = sadd.s32 %s215, 1
      %p219 = scmp.eq.s32.totalorder %s24, 1
      %p220 = scmp.ne.s32.totalorder %s215, %s217
      %p221 = scmp.eq.s32.totalorder %s24, 0
      %p222 = por %p220, %p221
      %p223 = scmp.ne.s32.totalorder %s215, %s217
      %p224 = scmp.eq.s32.totalorder %s29, 1
      %p225 = por %p223, %p224
      %p226 = scmp.ne.s32.totalorder %s217, %s218
      %p227 = scmp.eq.s32.totalorder %s29, 0
      %p228 = por %p226, %p227
      %p229 = scmp.ne.s32.totalorder %s217, %s218
      %p230 = scmp.eq.s32.totalorder %s30, 1
      %p231 = por %p229, %p230
      %p233 = scmp.ne.s32.totalorder %s218, %s232
      %p234 = scmp.eq.s32.totalorder %s30, 0
      %p235 = por %p233, %p234
      %s237 = sadd.s32 %s236, 1
      %p240 = scmp.eq.s32.totalorder %s24, 1
      %p241 = scmp.ne.s32.totalorder %s236, %s238
      %p242 = scmp.eq.s32.totalorder %s24, 0
      %p243 = por %p241, %p242
      %p244 = scmp.ne.s32.totalorder %s236, %s238
      %p245 = scmp.eq.s32.totalorder %s29, 1
      %p246 = por %p244, %p245
      %p247 = scmp.ne.s32.totalorder %s238, %s239
      %p248 = scmp.eq.s32.totalorder %s29, 0
      %p249 = por %p247, %p248
      %p250 = scmp.ne.s32.totalorder %s238, %s239
      %p251 = scmp.eq.s32.totalorder %s30, 1
      %p252 = por %p250, %p251
      %p254 = scmp.ne.s32.totalorder %s239, %s253
      %p255 = scmp.eq.s32.totalorder %s30, 0
      %p256 = por %p254, %p255
      %s258 = sadd.s32 %s257, 1
      %p261 = scmp.eq.s32.totalorder %s24, 1
      %p262 = scmp.ne.s32.totalorder %s257, %s259
      %p263 = scmp.eq.s32.totalorder %s24, 0
      %p264 = por %p262, %p263
      %p265 = scmp.ne.s32.totalorder %s257, %s259
      %p266 = scmp.eq.s32.totalorder %s29, 1
      %p267 = por %p265, %p266
      %p268 = scmp.ne.s32.totalorder %s259, %s260
      %p269 = scmp.eq.s32.totalorder %s29, 0
      %p270 = por %p268, %p269
      %p271 = scmp.ne.s32.totalorder %s259, %s260
      %p272 = scmp.eq.s32.totalorder %s30, 1
      %p273 = por %p271, %p272
      %p275 = scmp.ne.s32.totalorder %s260, %s274
      %p276 = scmp.eq.s32.totalorder %s30, 0
      %p277 = por %p275, %p276
      %s278 = ssub.s32 %s24, %s31
      %p279 = scmp.eq.s32.totalorder %s278, 0
      %s281 = sadd.s32 %s280, 1
      %s282 = scalar_select %p279, %s280, %s281
      %p285 = pneg %p279
      %p286 = scmp.eq.s32.totalorder %s24, 1
      %p287 = por %p285, %p286
      %p288 = scmp.ne.s32.totalorder %s280, %s283
      %p289 = scmp.eq.s32.totalorder %s24, 0
      %p290 = por %p288, %p289
      %p291 = scmp.ne.s32.totalorder %s280, %s283
      %p292 = scmp.eq.s32.totalorder %s29, 1
      %p293 = por %p291, %p292
      %p294 = scmp.ne.s32.totalorder %s283, %s284
      %p295 = scmp.eq.s32.totalorder %s29, 0
      %p296 = por %p294, %p295
      %p297 = scmp.ne.s32.totalorder %s283, %s284
      %p298 = scmp.eq.s32.totalorder %s30, 1
      %p299 = por %p297, %p298
      %p301 = scmp.ne.s32.totalorder %s284, %s300
      %p302 = scmp.eq.s32.totalorder %s30, 0
      %p303 = por %p301, %p302
      %p304 = scmp.le.s32.totalorder 1, %s24
      %p305 = scmp.lt.s32.totalorder %s24, 3
      %p306 = pnand %p304, %p305
      %p307 = pneg %p306
      // Predicated region
      $region9: #{tpu_custom_call.1} parent=5 // pred_check
        _
      $region10: #{tpu_custom_call.1} parent=5 // pred_check_branch
        %309 = sbr.rel (%p306) target = $region12
      $region11: #{tpu_custom_call.1} parent=5 // pred_region
        %s310 = ssub.s32 %s24, 1
        // Predicated region
        $region13: #{tpu_custom_call.1} parent=11 // pred_check
          %p311 = pneg %p123
        $region14: #{tpu_custom_call.1} parent=11 // pred_check_branch
          %313 = sbr.rel (%p311) target = $region16
        $region15: #{tpu_custom_call.1} parent=11 // pred_region
          _
        $region16: #{tpu_custom_call.1} parent=11 // pred_fallthru
          _
        // Predicated region
        $region17: #{tpu_custom_call.1} parent=11 // pred_check
          %p314 = pneg %p144
        $region18: #{tpu_custom_call.1} parent=11 // pred_check_branch
          %316 = sbr.rel (%p314) target = $region20
        $region19: #{tpu_custom_call.1} parent=11 // pred_region
          %s318 = ssub.s32 128, 128
          %319 = vsyncadd [#allocation6], %s318
          %s321 = sshll.u32 [#allocation5], 4
          %s322 = int_to_ptr.vmem [resolvable:$true] %s321
          %324 = dma.hbm_to_vmem [thread:$0]  %s4, 128, %s322, [#allocation6]
        $region20: #{tpu_custom_call.1} parent=11 // pred_fallthru
          _
        // Predicated region
        $region21: #{tpu_custom_call.1} parent=11 // pred_check
          %p325 = pneg %p165
        $region22: #{tpu_custom_call.1} parent=11 // pred_check_branch
          %327 = sbr.rel (%p325) target = $region24
        $region23: #{tpu_custom_call.1} parent=11 // pred_region
          %s329 = ssub.s32 16, 16
          %330 = vsyncadd [#allocation6], %s329
          %s332 = sshll.u32 [#allocation7], 4
          %s333 = int_to_ptr.vmem [resolvable:$true] %s332
          %335 = dma.hbm_to_vmem [thread:$0]  %s5, 16, %s333, [#allocation6]
        $region24: #{tpu_custom_call.1} parent=11 // pred_fallthru
          _
        // Predicated region
        $region25: #{tpu_custom_call.1} parent=11 // pred_check
          %p336 = pneg %p186
        $region26: #{tpu_custom_call.1} parent=11 // pred_check_branch
          %338 = sbr.rel (%p336) target = $region28
        $region27: #{tpu_custom_call.1} parent=11 // pred_region
          _
        $region28: #{tpu_custom_call.1} parent=11 // pred_fallthru
          _
        // Predicated region
        $region29: #{tpu_custom_call.1} parent=11 // pred_check
          %p339 = pneg %p207
        $region30: #{tpu_custom_call.1} parent=11 // pred_check_branch
          %341 = sbr.rel (%p339) target = $region32
        $region31: #{tpu_custom_call.1} parent=11 // pred_region
          _
        $region32: #{tpu_custom_call.1} parent=11 // pred_fallthru
          _
        // Predicated region
        $region33: #{tpu_custom_call.1} parent=11 // pred_check
          %p342 = pneg %p228
        $region34: #{tpu_custom_call.1} parent=11 // pred_check_branch
          %344 = sbr.rel (%p342) target = $region36
        $region35: #{tpu_custom_call.1} parent=11 // pred_region
          _
        $region36: #{tpu_custom_call.1} parent=11 // pred_fallthru
          _
        // Predicated region
        $region37: #{tpu_custom_call.1} parent=11 // pred_check
          %p345 = pneg %p249
        $region38: #{tpu_custom_call.1} parent=11 // pred_check_branch
          %347 = sbr.rel (%p345) target = $region40
        $region39: #{tpu_custom_call.1} parent=11 // pred_region
          _
        $region40: #{tpu_custom_call.1} parent=11 // pred_fallthru
          _
        // Predicated region
        $region41: #{tpu_custom_call.1} parent=11 // pred_check
          %p348 = pneg %p270
        $region42: #{tpu_custom_call.1} parent=11 // pred_check_branch
          %350 = sbr.rel (%p348) target = $region44
        $region43: #{tpu_custom_call.1} parent=11 // pred_region
          _
        $region44: #{tpu_custom_call.1} parent=11 // pred_fallthru
          _
      $region12: #{tpu_custom_call.1} parent=5 // pred_fallthru
        _
      %p351 = scmp.lt.s32.totalorder %s24, 2
      // Predicated region
      $region45: #{tpu_custom_call.1} parent=5 // pred_check
        %p352 = pneg %p351
      $region46: #{tpu_custom_call.1} parent=5 // pred_check_branch
        %354 = sbr.rel (%p352) target = $region48
      $region47: #{tpu_custom_call.1} parent=5 // pred_region
        // Predicated region
        $region49: #{tpu_custom_call.1} parent=47 // pred_check
          %p355 = pneg %p44
        $region50: #{tpu_custom_call.1} parent=47 // pred_check_branch
          %357 = sbr.rel (%p355) target = $region52
        $region51: #{tpu_custom_call.1} parent=47 // pred_region
          %p358 = scmp.lt.s32.totalorder %s24, 1
          %s359 = scalar_select %p358, %s24, 1
          %s360 = smul.addr %s359, 8
          %s361 = scalar_lea.vmem %s0, %s360
        $region52: #{tpu_custom_call.1} parent=47 // pred_fallthru
          _
        // Predicated region
        $region53: #{tpu_custom_call.1} parent=47 // pred_check
          %p362 = pneg %p70
        $region54: #{tpu_custom_call.1} parent=47 // pred_check_branch
          %364 = sbr.rel (%p362) target = $region56
        $region55: #{tpu_custom_call.1} parent=47 // pred_region
          %p365 = scmp.lt.s32.totalorder %s24, 1
          %s366 = scalar_select %p365, %s24, 1
          %s367 = smul.addr %s366, 8
          %s368 = scalar_lea.vmem %s1, %s367
        $region56: #{tpu_custom_call.1} parent=47 // pred_fallthru
          _
        // Predicated region
        $region57: #{tpu_custom_call.1} parent=47 // pred_check
          %p369 = pneg %p96
        $region58: #{tpu_custom_call.1} parent=47 // pred_check_branch
          %371 = sbr.rel (%p369) target = $region60
        $region59: #{tpu_custom_call.1} parent=47 // pred_region
          %s372 = sand.u32 %s86, 1
          %s373 = scalar_lea.sflag [#allocation3], %s372
          %s374 = sand.u32 %s86, 1
          %s375 = scalar_lea.vmem [#allocation2], %s374
          %s377 = ssub.s32 16, 16
          %378 = vsyncadd %s373, %s377
          %s379 = smul.addr %s24, 16
          %s380 = scalar_lea.hbm %s2, %s379
          %s382 = sshll.u32 %s375, 4
          %s383 = int_to_ptr.vmem [resolvable:$true] %s382
          %385 = dma.hbm_to_vmem [thread:$0]  %s380, 16, %s383, %s373
        $region60: #{tpu_custom_call.1} parent=47 // pred_fallthru
          _
      $region48: #{tpu_custom_call.1} parent=5 // pred_fallthru
        _
      %p386 = scmp.le.s32.totalorder 1, %s24
      %p387 = scmp.lt.s32.totalorder %s24, 3
      %p388 = pnand %p386, %p387
      %p389 = pneg %p388
      // Predicated region
      $region61: #{tpu_custom_call.1} parent=5 // pred_check
        _
      $region62: #{tpu_custom_call.1} parent=5 // pred_check_branch
        %391 = sbr.rel (%p388) target = $region64
      $region63: #{tpu_custom_call.1} parent=5 // pred_region
        %s392 = ssub.s32 %s24, 1
        %s393 = sand.u32 %s89, 1
        %s394 = scalar_lea.sflag [#allocation3], %s393
        %s395 = sand.u32 %s89, 1
        %s396 = scalar_lea.vmem [#allocation2], %s395
        // Predicated region
        $region65: #{tpu_custom_call.1} parent=63 // pred_check
          %p397 = pneg %p102
        $region66: #{tpu_custom_call.1} parent=63 // pred_check_branch
          %399 = sbr.rel (%p397) target = $region68
        $region67: #{tpu_custom_call.1} parent=63 // pred_region
          %400 = dma.done %s394, 16
        $region68: #{tpu_custom_call.1} parent=63 // pred_fallthru
          _
        // Predicated region
        $region69: #{tpu_custom_call.1} parent=63 // pred_check
          %p401 = pneg %p144
        $region70: #{tpu_custom_call.1} parent=63 // pred_check_branch
          %403 = sbr.rel (%p401) target = $region72
        $region71: #{tpu_custom_call.1} parent=63 // pred_region
          %404 = dma.done [#allocation6], 128
        $region72: #{tpu_custom_call.1} parent=63 // pred_fallthru
          _
        // Predicated region
        $region73: #{tpu_custom_call.1} parent=63 // pred_check
          %p405 = pneg %p165
        $region74: #{tpu_custom_call.1} parent=63 // pred_check_branch
          %407 = sbr.rel (%p405) target = $region76
        $region75: #{tpu_custom_call.1} parent=63 // pred_region
          %408 = dma.done [#allocation6], 16
        $region76: #{tpu_custom_call.1} parent=63 // pred_fallthru
          _
        %p409 = scmp.lt.s32.totalorder %s29, 1
        %s410 = scalar_select %p409, %s29, 1
        %s411 = smul.addr %s410, 8
        %s412 = scalar_lea.vmem %s0, %s411
        %p413 = pneg %p50
        %p414 = pneg %p47
        %p415 = scmp.lt.s32.totalorder %s29, 1
        %s416 = scalar_select %p415, %s29, 1
        %s417 = smul.addr %s416, 8
        %s418 = scalar_lea.vmem %s1, %s417
        %p419 = pneg %p76
        %p420 = pneg %p73
        %s421 = sand.u32 %s89, 1
        %s422 = scalar_lea.sflag [#allocation3], %s421
        %s423 = sand.u32 %s89, 1
        %s424 = scalar_lea.vmem [#allocation2], %s423
        %p425 = pneg %p102
        %p426 = pneg %p99
        %p427 = pneg %p123
        %p428 = pneg %p120
        %p429 = pneg %p144
        %p430 = pneg %p141
        %p431 = pneg %p165
        %p432 = pneg %p162
        %p433 = pneg %p186
        %p434 = pneg %p183
        %p435 = pneg %p207
        %p436 = pneg %p204
        %p437 = pneg %p228
        %p438 = pneg %p225
        %p439 = pneg %p249
        %p440 = pneg %p246
        %p441 = pneg %p270
        %p442 = pneg %p267
        %p443 = pneg %p296
        %p444 = pneg %p293
        %s445 = sand.u32 %s283, 1
        %s446 = scalar_lea.sflag [#allocation4], %s445
        %s447 = sand.u32 %s283, 1
        %s448 = smul.addr %s447, 8
        %s449 = scalar_lea.vmem [#allocation8], %s448
        %p450 = scmp.lt.s32.totalorder %s29, 1
        %s451 = scalar_select %p450, %s29, 1
        %s452 = smul.addr %s451, 8
        %s453 = scalar_lea.vmem %s0, %s452
        %p454 = scmp.lt.s32.totalorder %s29, 1
        %s455 = scalar_select %p454, %s29, 1
        %s456 = smul.addr %s455, 8
        %s457 = scalar_lea.vmem %s1, %s456
        %v458 = vld [vmem:[%s457] sm:$0x3f]
        %v459 = vld [vmem:[%s3] sm:$0xff]
        %v460 = vld [vmem:[%s3 + $0x8] sm:$0xff]
        %vm461 = vcmask 130048
        %v463 = vsel %vm461, %v458, 0
        %465 = vmatprep.subr.mxu0 0.0
        %466 = vmatpush1.msra.mxu0 %v459
        %467 = vmatprep.subr.mxu0 0.0
        %468 = vmatpush1.msra.mxu0 %v460
        %469 = vmatprep.subr.mxu0 0.0
        %470 = vmatpush1.msra.mxu0 0.0
        %471 = vmatprep.subr.mxu0 0.0
        %472 = vmatpush1.msra.mxu0 0.0
        %473 = vmatprep.subr.mxu0 0.0
        %474 = vmatpush1.msra.mxu0 0.0
        %475 = vmatprep.subr.mxu0 0.0
        %476 = vmatpush1.msra.mxu0 0.0
        %477 = vmatprep.subr.mxu0 0.0
        %478 = vmatpush1.msra.mxu0 0.0
        %479 = vmatprep.subr.mxu0 0.0
        %480 = vmatpush1.msra.mxu0 0.0
        %481 = vmatprep.subr.mxu0 0.0
        %482 = vmatpush1.msra.mxu0 0.0
        %483 = vmatprep.subr.mxu0 0.0
        %484 = vmatpush1.msra.mxu0 0.0
        %485 = vmatprep.subr.mxu0 0.0
        %486 = vmatpush1.msra.mxu0 0.0
        %487 = vmatprep.subr.mxu0 0.0
        %488 = vmatpush1.msra.mxu0 0.0
        %489 = vmatprep.subr.mxu0 0.0
        %490 = vmatpush1.msra.mxu0 0.0
        %491 = vmatprep.subr.mxu0 0.0
        %492 = vmatpush1.msra.mxu0 0.0
        %493 = vmatprep.subr.mxu0 0.0
        %494 = vmatpush1.msra.mxu0 0.0
        %495 = vmatprep.subr.mxu0 0.0
        %496 = vmatpush1.msra.mxu0 0.0
        %497 = vmatprep.subr.mxu0 0.0
        %498 = vmatpush1.msra.mxu0 0.0
        %499 = vmatprep.subr.mxu0 0.0
        %500 = vmatpush1.msra.mxu0 0.0
        %501 = vmatprep.subr.mxu0 0.0
        %502 = vmatpush1.msra.mxu0 0.0
        %503 = vmatprep.subr.mxu0 0.0
        %504 = vmatpush1.msra.mxu0 0.0
        %505 = vmatprep.subr.mxu0 0.0
        %506 = vmatpush1.msra.mxu0 0.0
        %507 = vmatprep.subr.mxu0 0.0
        %508 = vmatpush1.msra.mxu0 0.0
        %509 = vmatprep.subr.mxu0 0.0
        %510 = vmatpush1.msra.mxu0 0.0
        %511 = vmatprep.subr.mxu0 0.0
        %512 = vmatpush1.msra.mxu0 0.0
        %513 = vmatprep.subr.mxu0 0.0
        %514 = vmatpush1.msra.mxu0 0.0
        %515 = vmatprep.subr.mxu0 0.0
        %516 = vmatpush1.msra.mxu0 0.0
        %517 = vmatprep.subr.mxu0 0.0
        %518 = vmatpush1.msra.mxu0 0.0
        %519 = vmatprep.subr.mxu0 0.0
        %520 = vmatpush1.msra.mxu0 0.0
        %521 = vmatprep.subr.mxu0 0.0
        %522 = vmatpush1.msra.mxu0 0.0
        %523 = vmatprep.subr.mxu0 0.0
        %524 = vmatpush1.msra.mxu0 0.0
        %525 = vmatprep.subr.mxu0 0.0
        %526 = vmatpush1.msra.mxu0 0.0
        %527 = vmatprep.subr.mxu0 0.0
        %528 = vmatpush1.msra.mxu0 0.0
        %529 = vmatprep.mubr.f32.mxu0 0.0
        %530 = vmatmul.mubr.f32.gmra.mrb[0].mxu0 %v463
        %v531 = vpop.f32.mrb[0].mxu0
        %v532 = vadd.f32 0.0, %v531
        %v533 = vpop.f32.mrb[0].mxu0
        %534 = vdwg.mxu0
        %v535 = vld [vmem:[%s396] sm:$0x1]
        %v536 = vld [vmem:[#allocation5] sm:$0xff]
        %v537 = vld [vmem:[#allocation7] sm:$0x1]
        %vm538 = vcmask 64512
        %v540 = vsel %vm538, %v535, 0
        %542 = vmatprep.subr.mxu0 0.0
        %543 = vmatpush1.msra.mxu0 %v536
        %544 = vmatprep.subr.mxu0 0.0
        %545 = vmatpush1.msra.mxu0 0.0
        %546 = vmatprep.subr.mxu0 0.0
        %547 = vmatpush1.msra.mxu0 0.0
        %548 = vmatprep.subr.mxu0 0.0
        %549 = vmatpush1.msra.mxu0 0.0
        %550 = vmatprep.subr.mxu0 0.0
        %551 = vmatpush1.msra.mxu0 0.0
        %552 = vmatprep.subr.mxu0 0.0
        %553 = vmatpush1.msra.mxu0 0.0
        %554 = vmatprep.subr.mxu0 0.0
        %555 = vmatpush1.msra.mxu0 0.0
        %556 = vmatprep.subr.mxu0 0.0
        %557 = vmatpush1.msra.mxu0 0.0
        %558 = vmatprep.subr.mxu0 0.0
        %559 = vmatpush1.msra.mxu0 0.0
        %560 = vmatprep.subr.mxu0 0.0
        %561 = vmatpush1.msra.mxu0 0.0
        %562 = vmatprep.subr.mxu0 0.0
        %563 = vmatpush1.msra.mxu0 0.0
        %564 = vmatprep.subr.mxu0 0.0
        %565 = vmatpush1.msra.mxu0 0.0
        %566 = vmatprep.subr.mxu0 0.0
        %567 = vmatpush1.msra.mxu0 0.0
        %568 = vmatprep.subr.mxu0 0.0
        %569 = vmatpush1.msra.mxu0 0.0
        %570 = vmatprep.subr.mxu0 0.0
        %571 = vmatpush1.msra.mxu0 0.0
        %572 = vmatprep.subr.mxu0 0.0
        %573 = vmatpush1.msra.mxu0 0.0
        %574 = vmatprep.subr.mxu0 0.0
        %575 = vmatpush1.msra.mxu0 0.0
        %576 = vmatprep.subr.mxu0 0.0
        %577 = vmatpush1.msra.mxu0 0.0
        %578 = vmatprep.subr.mxu0 0.0
        %579 = vmatpush1.msra.mxu0 0.0
        %580 = vmatprep.subr.mxu0 0.0
        %581 = vmatpush1.msra.mxu0 0.0
        %582 = vmatprep.subr.mxu0 0.0
        %583 = vmatpush1.msra.mxu0 0.0
        %584 = vmatprep.subr.mxu0 0.0
        %585 = vmatpush1.msra.mxu0 0.0
        %586 = vmatprep.subr.mxu0 0.0
        %587 = vmatpush1.msra.mxu0 0.0
        %588 = vmatprep.subr.mxu0 0.0
        %589 = vmatpush1.msra.mxu0 0.0
        %590 = vmatprep.subr.mxu0 0.0
        %591 = vmatpush1.msra.mxu0 0.0
        %592 = vmatprep.subr.mxu0 0.0
        %593 = vmatpush1.msra.mxu0 0.0
        %594 = vmatprep.subr.mxu0 0.0
        %595 = vmatpush1.msra.mxu0 0.0
        %596 = vmatprep.subr.mxu0 0.0
        %597 = vmatpush1.msra.mxu0 0.0
        %598 = vmatprep.subr.mxu0 0.0
        %599 = vmatpush1.msra.mxu0 0.0
        %600 = vmatprep.subr.mxu0 0.0
        %601 = vmatpush1.msra.mxu0 0.0
        %602 = vmatprep.subr.mxu0 0.0
        %603 = vmatpush1.msra.mxu0 0.0
        %604 = vmatprep.subr.mxu0 0.0
        %605 = vmatpush1.msra.mxu0 0.0
        %606 = vmatprep.mubr.f32.mxu0 0.0
        %607 = vmatmul.mubr.f32.gmra.mrb[0].mxu0 %v540
        %v608 = vpop.f32.mrb[0].mxu0
        %v609 = vadd.f32 %v537, %v608
        %v610 = vpop.f32.mrb[0].mxu0
        %611 = vdwg.mxu0
        %v613 = vrot.slane %v532, 1
        %614 = vrot.lane.b32.xlu0 %v613, 112
        %v615 = vpop.permute.xlu0 %614
        %v617 = vadd.f32 %v532, %v615
        %v618 = vlaneseq
        %v619 = vshrl.u32 %v618, 7
        %v620 = vsub.s32 0, %v619
        %v621 = vrot.slane %v609, %v620
        %v622 = vadd.f32 %v617, %v621
        %vm623 = vcmp.ge.f32.partialorder %v622, 0.0
        %v624 = vmul.f32 %v622, 0.2
        %v625 = vsel %vm623, %v622, %v624
        %v626 = vld [vmem:[%s6] sm:$0xff]
        %v627 = vld [vmem:[%s6 + $0x8] sm:$0xff]
        %v629 = vsel %vm461, %v625, 0
        %631 = vmatprep.subr.mxu0 0.0
        %632 = vmatpush1.msra.mxu0 %v626
        %633 = vmatprep.subr.mxu0 0.0
        %634 = vmatpush1.msra.mxu0 %v627
        %635 = vmatprep.subr.mxu0 0.0
        %636 = vmatpush1.msra.mxu0 0.0
        %637 = vmatprep.subr.mxu0 0.0
        %638 = vmatpush1.msra.mxu0 0.0
        %639 = vmatprep.subr.mxu0 0.0
        %640 = vmatpush1.msra.mxu0 0.0
        %641 = vmatprep.subr.mxu0 0.0
        %642 = vmatpush1.msra.mxu0 0.0
        %643 = vmatprep.subr.mxu0 0.0
        %644 = vmatpush1.msra.mxu0 0.0
        %645 = vmatprep.subr.mxu0 0.0
        %646 = vmatpush1.msra.mxu0 0.0
        %647 = vmatprep.subr.mxu0 0.0
        %648 = vmatpush1.msra.mxu0 0.0
        %649 = vmatprep.subr.mxu0 0.0
        %650 = vmatpush1.msra.mxu0 0.0
        %651 = vmatprep.subr.mxu0 0.0
        %652 = vmatpush1.msra.mxu0 0.0
        %653 = vmatprep.subr.mxu0 0.0
        %654 = vmatpush1.msra.mxu0 0.0
        %655 = vmatprep.subr.mxu0 0.0
        %656 = vmatpush1.msra.mxu0 0.0
        %657 = vmatprep.subr.mxu0 0.0
        %658 = vmatpush1.msra.mxu0 0.0
        %659 = vmatprep.subr.mxu0 0.0
        %660 = vmatpush1.msra.mxu0 0.0
        %661 = vmatprep.subr.mxu0 0.0
        %662 = vmatpush1.msra.mxu0 0.0
        %663 = vmatprep.subr.mxu0 0.0
        %664 = vmatpush1.msra.mxu0 0.0
        %665 = vmatprep.subr.mxu0 0.0
        %666 = vmatpush1.msra.mxu0 0.0
        %667 = vmatprep.subr.mxu0 0.0
        %668 = vmatpush1.msra.mxu0 0.0
        %669 = vmatprep.subr.mxu0 0.0
        %670 = vmatpush1.msra.mxu0 0.0
        %671 = vmatprep.subr.mxu0 0.0
        %672 = vmatpush1.msra.mxu0 0.0
        %673 = vmatprep.subr.mxu0 0.0
        %674 = vmatpush1.msra.mxu0 0.0
        %675 = vmatprep.subr.mxu0 0.0
        %676 = vmatpush1.msra.mxu0 0.0
        %677 = vmatprep.subr.mxu0 0.0
        %678 = vmatpush1.msra.mxu0 0.0
        %679 = vmatprep.subr.mxu0 0.0
        %680 = vmatpush1.msra.mxu0 0.0
        %681 = vmatprep.subr.mxu0 0.0
        %682 = vmatpush1.msra.mxu0 0.0
        %683 = vmatprep.subr.mxu0 0.0
        %684 = vmatpush1.msra.mxu0 0.0
        %685 = vmatprep.subr.mxu0 0.0
        %686 = vmatpush1.msra.mxu0 0.0
        %687 = vmatprep.subr.mxu0 0.0
        %688 = vmatpush1.msra.mxu0 0.0
        %689 = vmatprep.subr.mxu0 0.0
        %690 = vmatpush1.msra.mxu0 0.0
        %691 = vmatprep.subr.mxu0 0.0
        %692 = vmatpush1.msra.mxu0 0.0
        %693 = vmatprep.subr.mxu0 0.0
        %694 = vmatpush1.msra.mxu0 0.0
        %695 = vmatprep.mubr.f32.mxu0 0.0
        %696 = vmatmul.mubr.f32.gmra.mrb[0].mxu0 %v629
        %v697 = vpop.f32.mrb[0].mxu0
        %v698 = vadd.f32 0.0, %v697
        %v699 = vpop.f32.mrb[0].mxu0
        %700 = vdwg.mxu0
        %v702 = vrot.slane %v698, 1
        %703 = vrot.lane.b32.xlu0 %v702, 96
        %v704 = vpop.permute.xlu0 %703
        %v706 = vadd.f32 %v698, %v704
        %v707 = vld [vmem:[%s7] sm:$0x1]
        %v709 = vlaneseq
        %v710 = vshrl.u32 %v709, 7
        %v711 = vsub.s32 0, %v710
        %v712 = vrot.slane %v707, %v711
        %v714 = vadd.f32 %v706, %v712
        %vm715 = vcmp.ge.f32.partialorder %v714, 0.0
        %v716 = vmul.f32 %v714, 0.2
        %v717 = vsel %vm715, %v714, %v716
        %v718 = vld [vmem:[%s8] sm:$0xff]
        %v719 = vld [vmem:[%s8 + $0x8] sm:$0xff]
        %v720 = vld [vmem:[%s8 + $0x10] sm:$0xff]
        %v721 = vld [vmem:[%s8 + $0x18] sm:$0xff]
        %vm722 = vcmask 261120
        %v724 = vsel %vm722, %v717, 0
        %726 = vmatprep.subr.mxu0 0.0
        %727 = vmatpush1.msra.mxu0 %v718
        %728 = vmatprep.subr.mxu0 0.0
        %729 = vmatpush1.msra.mxu0 %v719
        %730 = vmatprep.subr.mxu0 0.0
        %731 = vmatpush1.msra.mxu0 %v720
        %732 = vmatprep.subr.mxu0 0.0
        %733 = vmatpush1.msra.mxu0 %v721
        %734 = vmatprep.subr.mxu0 0.0
        %735 = vmatpush1.msra.mxu0 0.0
        %736 = vmatprep.subr.mxu0 0.0
        %737 = vmatpush1.msra.mxu0 0.0
        %738 = vmatprep.subr.mxu0 0.0
        %739 = vmatpush1.msra.mxu0 0.0
        %740 = vmatprep.subr.mxu0 0.0
        %741 = vmatpush1.msra.mxu0 0.0
        %742 = vmatprep.subr.mxu0 0.0
        %743 = vmatpush1.msra.mxu0 0.0
        %744 = vmatprep.subr.mxu0 0.0
        %745 = vmatpush1.msra.mxu0 0.0
        %746 = vmatprep.subr.mxu0 0.0
        %747 = vmatpush1.msra.mxu0 0.0
        %748 = vmatprep.subr.mxu0 0.0
        %749 = vmatpush1.msra.mxu0 0.0
        %750 = vmatprep.subr.mxu0 0.0
        %751 = vmatpush1.msra.mxu0 0.0
        %752 = vmatprep.subr.mxu0 0.0
        %753 = vmatpush1.msra.mxu0 0.0
        %754 = vmatprep.subr.mxu0 0.0
        %755 = vmatpush1.msra.mxu0 0.0
        %756 = vmatprep.subr.mxu0 0.0
        %757 = vmatpush1.msra.mxu0 0.0
        %758 = vmatprep.subr.mxu0 0.0
        %759 = vmatpush1.msra.mxu0 0.0
        %760 = vmatprep.subr.mxu0 0.0
        %761 = vmatpush1.msra.mxu0 0.0
        %762 = vmatprep.subr.mxu0 0.0
        %763 = vmatpush1.msra.mxu0 0.0
        %764 = vmatprep.subr.mxu0 0.0
        %765 = vmatpush1.msra.mxu0 0.0
        %766 = vmatprep.subr.mxu0 0.0
        %767 = vmatpush1.msra.mxu0 0.0
        %768 = vmatprep.subr.mxu0 0.0
        %769 = vmatpush1.msra.mxu0 0.0
        %770 = vmatprep.subr.mxu0 0.0
        %771 = vmatpush1.msra.mxu0 0.0
        %772 = vmatprep.subr.mxu0 0.0
        %773 = vmatpush1.msra.mxu0 0.0
        %774 = vmatprep.subr.mxu0 0.0
        %775 = vmatpush1.msra.mxu0 0.0
        %776 = vmatprep.subr.mxu0 0.0
        %777 = vmatpush1.msra.mxu0 0.0
        %778 = vmatprep.subr.mxu0 0.0
        %779 = vmatpush1.msra.mxu0 0.0
        %780 = vmatprep.subr.mxu0 0.0
        %781 = vmatpush1.msra.mxu0 0.0
        %782 = vmatprep.subr.mxu0 0.0
        %783 = vmatpush1.msra.mxu0 0.0
        %784 = vmatprep.subr.mxu0 0.0
        %785 = vmatpush1.msra.mxu0 0.0
        %786 = vmatprep.subr.mxu0 0.0
        %787 = vmatpush1.msra.mxu0 0.0
        %788 = vmatprep.subr.mxu0 0.0
        %789 = vmatpush1.msra.mxu0 0.0
        %790 = vmatprep.mubr.f32.mxu0 0.0
        %791 = vmatmul.mubr.f32.gmra.mrb[0].mxu0 %v724
        %v792 = vpop.f32.mrb[0].mxu0
        %v793 = vadd.f32 0.0, %v792
        %v794 = vpop.f32.mrb[0].mxu0
        %795 = vdwg.mxu0
        %v796 = vld [vmem:[%s453] sm:$0xff]
        %v797 = vmul.f32 %v796, 0.0625
        %v798 = vfloor.f32 %v797
        %v799 = vmul.f32 %v798, 16.0
        %v800 = vadd.f32 %v799, 16.0
        %v801 = vsub.f32 %v796, %v799
        %v802 = vmul.f32 %v801, 0.0625
        %v803 = vsub.f32 1.0, %v802
        %v804 = vlaneseq
        %v805 = vand.u32 %v804, 127
        %v806 = vcvt.f32.s32.to.zero.pseudo %v798
        %807 = vset.pattern.permute.xlu0 0
        %808 = vperm.xlu0 %807, %v806
        %v809 = vpop.permute.xlu0 %808
        %vm810 = vcmp.eq.s32.totalorder %v805, %v809
        %v811 = vsel %vm810, 1, 0
        %v812 = vcvt.s32.f32 %v811
        %v813 = vadd.s32 %v806, 1
        %814 = vset.pattern.permute.xlu0 0
        %815 = vperm.xlu0 %814, %v813
        %v816 = vpop.permute.xlu0 %815
        %vm817 = vcmp.eq.s32.totalorder %v805, %v816
        %v818 = vsel %vm817, 1, 0
        %v819 = vcvt.s32.f32 %v818
        %vm820 = vcmask 31744
        %v822 = vsel %vm820, %v812, 0
        %vm824 = vcmask 1043456
        %v826 = vsel %vm824, %v793, 0
        %828 = vmatprep.subr.mxu0 0.0
        %829 = vmatpush1.msra.mxu0 %v826
        %830 = vmatprep.subr.mxu0 0.0
        %831 = vmatpush1.msra.mxu0 0.0
        %832 = vmatprep.subr.mxu0 0.0
        %833 = vmatpush1.msra.mxu0 0.0
        %834 = vmatprep.subr.mxu0 0.0
        %835 = vmatpush1.msra.mxu0 0.0
        %836 = vmatprep.subr.mxu0 0.0
        %837 = vmatpush1.msra.mxu0 0.0
        %838 = vmatprep.subr.mxu0 0.0
        %839 = vmatpush1.msra.mxu0 0.0
        %840 = vmatprep.subr.mxu0 0.0
        %841 = vmatpush1.msra.mxu0 0.0
        %842 = vmatprep.subr.mxu0 0.0
        %843 = vmatpush1.msra.mxu0 0.0
        %844 = vmatprep.subr.mxu0 0.0
        %845 = vmatpush1.msra.mxu0 0.0
        %846 = vmatprep.subr.mxu0 0.0
        %847 = vmatpush1.msra.mxu0 0.0
        %848 = vmatprep.subr.mxu0 0.0
        %849 = vmatpush1.msra.mxu0 0.0
        %850 = vmatprep.subr.mxu0 0.0
        %851 = vmatpush1.msra.mxu0 0.0
        %852 = vmatprep.subr.mxu0 0.0
        %853 = vmatpush1.msra.mxu0 0.0
        %854 = vmatprep.subr.mxu0 0.0
        %855 = vmatpush1.msra.mxu0 0.0
        %856 = vmatprep.subr.mxu0 0.0
        %857 = vmatpush1.msra.mxu0 0.0
        %858 = vmatprep.subr.mxu0 0.0
        %859 = vmatpush1.msra.mxu0 0.0
        %860 = vmatprep.subr.mxu0 0.0
        %861 = vmatpush1.msra.mxu0 0.0
        %862 = vmatprep.subr.mxu0 0.0
        %863 = vmatpush1.msra.mxu0 0.0
        %864 = vmatprep.subr.mxu0 0.0
        %865 = vmatpush1.msra.mxu0 0.0
        %866 = vmatprep.subr.mxu0 0.0
        %867 = vmatpush1.msra.mxu0 0.0
        %868 = vmatprep.subr.mxu0 0.0
        %869 = vmatpush1.msra.mxu0 0.0
        %870 = vmatprep.subr.mxu0 0.0
        %871 = vmatpush1.msra.mxu0 0.0
        %872 = vmatprep.subr.mxu0 0.0
        %873 = vmatpush1.msra.mxu0 0.0
        %874 = vmatprep.subr.mxu0 0.0
        %875 = vmatpush1.msra.mxu0 0.0
        %876 = vmatprep.subr.mxu0 0.0
        %877 = vmatpush1.msra.mxu0 0.0
        %878 = vmatprep.subr.mxu0 0.0
        %879 = vmatpush1.msra.mxu0 0.0
        %880 = vmatprep.subr.mxu0 0.0
        %881 = vmatpush1.msra.mxu0 0.0
        %882 = vmatprep.subr.mxu0 0.0
        %883 = vmatpush1.msra.mxu0 0.0
        %884 = vmatprep.subr.mxu0 0.0
        %885 = vmatpush1.msra.mxu0 0.0
        %886 = vmatprep.subr.mxu0 0.0
        %887 = vmatpush1.msra.mxu0 0.0
        %888 = vmatprep.subr.mxu0 0.0
        %889 = vmatpush1.msra.mxu0 0.0
        %890 = vmatprep.subr.mxu0 0.0
        %891 = vmatpush1.msra.mxu0 0.0
        %892 = vmatprep.mubr.f32.mxu0 0.0
        %893 = vmatmul.mubr.f32.gmra.mrb[0].mxu0 %v822
        %v894 = vpop.f32.mrb[0].mxu0
        %v895 = vadd.f32 0.0, %v894
        %v896 = vpop.f32.mrb[0].mxu0
        %897 = vdwg.mxu0
        %v899 = vsel %vm820, %v819, 0
        %901 = vmatprep.subr.mxu0 0.0
        %902 = vmatpush1.msra.mxu0 %v826
        %903 = vmatprep.subr.mxu0 0.0
        %904 = vmatpush1.msra.mxu0 0.0
        %905 = vmatprep.subr.mxu0 0.0
        %906 = vmatpush1.msra.mxu0 0.0
        %907 = vmatprep.subr.mxu0 0.0
        %908 = vmatpush1.msra.mxu0 0.0
        %909 = vmatprep.subr.mxu0 0.0
        %910 = vmatpush1.msra.mxu0 0.0
        %911 = vmatprep.subr.mxu0 0.0
        %912 = vmatpush1.msra.mxu0 0.0
        %913 = vmatprep.subr.mxu0 0.0
        %914 = vmatpush1.msra.mxu0 0.0
        %915 = vmatprep.subr.mxu0 0.0
        %916 = vmatpush1.msra.mxu0 0.0
        %917 = vmatprep.subr.mxu0 0.0
        %918 = vmatpush1.msra.mxu0 0.0
        %919 = vmatprep.subr.mxu0 0.0
        %920 = vmatpush1.msra.mxu0 0.0
        %921 = vmatprep.subr.mxu0 0.0
        %922 = vmatpush1.msra.mxu0 0.0
        %923 = vmatprep.subr.mxu0 0.0
        %924 = vmatpush1.msra.mxu0 0.0
        %925 = vmatprep.subr.mxu0 0.0
        %926 = vmatpush1.msra.mxu0 0.0
        %927 = vmatprep.subr.mxu0 0.0
        %928 = vmatpush1.msra.mxu0 0.0
        %929 = vmatprep.subr.mxu0 0.0
        %930 = vmatpush1.msra.mxu0 0.0
        %931 = vmatprep.subr.mxu0 0.0
        %932 = vmatpush1.msra.mxu0 0.0
        %933 = vmatprep.subr.mxu0 0.0
        %934 = vmatpush1.msra.mxu0 0.0
        %935 = vmatprep.subr.mxu0 0.0
        %936 = vmatpush1.msra.mxu0 0.0
        %937 = vmatprep.subr.mxu0 0.0
        %938 = vmatpush1.msra.mxu0 0.0
        %939 = vmatprep.subr.mxu0 0.0
        %940 = vmatpush1.msra.mxu0 0.0
        %941 = vmatprep.subr.mxu0 0.0
        %942 = vmatpush1.msra.mxu0 0.0
        %943 = vmatprep.subr.mxu0 0.0
        %944 = vmatpush1.msra.mxu0 0.0
        %945 = vmatprep.subr.mxu0 0.0
        %946 = vmatpush1.msra.mxu0 0.0
        %947 = vmatprep.subr.mxu0 0.0
        %948 = vmatpush1.msra.mxu0 0.0
        %949 = vmatprep.subr.mxu0 0.0
        %950 = vmatpush1.msra.mxu0 0.0
        %951 = vmatprep.subr.mxu0 0.0
        %952 = vmatpush1.msra.mxu0 0.0
        %953 = vmatprep.subr.mxu0 0.0
        %954 = vmatpush1.msra.mxu0 0.0
        %955 = vmatprep.subr.mxu0 0.0
        %956 = vmatpush1.msra.mxu0 0.0
        %957 = vmatprep.subr.mxu0 0.0
        %958 = vmatpush1.msra.mxu0 0.0
        %959 = vmatprep.subr.mxu0 0.0
        %960 = vmatpush1.msra.mxu0 0.0
        %961 = vmatprep.subr.mxu0 0.0
        %962 = vmatpush1.msra.mxu0 0.0
        %963 = vmatprep.subr.mxu0 0.0
        %964 = vmatpush1.msra.mxu0 0.0
        %965 = vmatprep.mubr.f32.mxu0 0.0
        %966 = vmatmul.mubr.f32.gmra.mrb[0].mxu0 %v899
        %v967 = vpop.f32.mrb[0].mxu0
        %v968 = vadd.f32 0.0, %v967
        %v969 = vpop.f32.mrb[0].mxu0
        %970 = vdwg.mxu0
        %v971 = vtanh.pop %v895
        %v972 = vadd.f32 %v971, 1.0
        %v973 = vld [vmem:[%s9] sm:$0x1]
        %v975 = vlaneseq
        %v976 = vshrl.u32 %v975, 7
        %v977 = vsub.s32 0, %v976
        %v978 = vrot.slane %v973, %v977
        %v980 = vmul.f32 %v972, %v978
        %v981 = vld [vmem:[%s10] sm:$0x1]
        %v983 = vlaneseq
        %v984 = vshrl.u32 %v983, 7
        %v985 = vsub.s32 0, %v984
        %v986 = vrot.slane %v981, %v985
        %987 = vrot.lane.b32.xlu0 %v986, 16
        %v988 = vpop.permute.xlu0 %987
        %v990 = vmul.f32 %v895, %v988
        %992 = vset.pattern.permute.xlu0 0
        %993 = vperm.xlu0 %992, %v796
        %v994 = vpop.permute.xlu0 %993
        %v996 = vmul.f32 %v980, %v994
        %998 = vrot.lane.b32.xlu0 %v990, 112
        %v999 = vpop.permute.xlu0 %998
        %v1001 = vadd.f32 %v996, %v999
        %1003 = vset.pattern.permute.xlu0 0
        %1004 = vperm.xlu0 %1003, %v799
        %v1005 = vpop.permute.xlu0 %1004
        %v1007 = vmul.f32 %v980, %v1005
        %v1008 = vadd.f32 %v1007, %v999
        %1010 = vset.pattern.permute.xlu0 0
        %1011 = vperm.xlu0 %1010, %v800
        %v1012 = vpop.permute.xlu0 %1011
        %v1014 = vmul.f32 %v980, %v1012
        %v1015 = vadd.f32 %v1014, %v999
        %v1016 = vand.u32 2147483647, %v1001
        %vm1017 = vcmp.le.f32.partialorder %v1016, 0.7853982
        %vm1018 = vcmp.lt.s32.totalorder %v1001, 0
        %v1019 = vand.u32 %v1001, 2139095040
        %v1020 = vshrl.u32 %v1019, 23
        %v1021 = vsub.s32 %v1020, 127
        %v1022 = vand.u32 2147483647, %v1001
        %v1023 = vand.u32 %v1022, 8388607
        %v1024 = vor.u32 %v1023, 8388608
        %v1025 = vsub.s32 0, %v1024
        %v1026 = vadd.s32 %v1021, 1
        %vm1027 = vcmp.gt.s32.totalorder %v1026, 0
        %v1028 = vsel %vm1027, %v1026, 0
        %v1029 = vshrl.u32 %v1028, 5
        %v1030 = vand.u32 %v1028, 31
        %v1031 = vsub.s32 32, %v1030
        %v1032 = vshrl.u32 683565275, %v1031
        %v1033 = vshll.u32 683565275, %v1030
        %v1034 = vshrl.u32 2475754826, %v1031
        %v1035 = vor.u32 %v1033, %v1034
        %v1036 = vshll.u32 2475754826, %v1030
        %v1037 = vshrl.u32 2131351028, %v1031
        %v1038 = vor.u32 %v1036, %v1037
        %v1039 = vshll.u32 2131351028, %v1030
        %v1040 = vshrl.u32 2102212464, %v1031
        %v1041 = vor.u32 %v1039, %v1040
        %v1042 = vshll.u32 2102212464, %v1030
        %v1043 = vshrl.u32 920167782, %v1031
        %v1044 = vor.u32 %v1042, %v1043
        %v1045 = vshll.u32 920167782, %v1030
        %v1046 = vshrl.u32 1326507024, %v1031
        %v1047 = vor.u32 %v1045, %v1046
        %vm1048 = vcmp.lt.s32.totalorder %v1029, 1
        %vm1049 = vcmp.lt.s32.totalorder %v1029, 2
        %vm1050 = vcmp.lt.s32.totalorder %v1029, 3
        %vm1051 = vcmp.lt.s32.totalorder %v1029, 4
        %v1052 = vsel %vm1048, %v1032, %v1035
        %v1053 = vsel %vm1051, %v1041, 2102212464
        %v1054 = vsel %vm1050, %v1038, %v1053
        %v1055 = vsel %vm1049, %v1052, %v1054
        %v1056 = vsel %vm1048, %v1035, %v1038
        %v1057 = vsel %vm1051, %v1044, 920167782
        %v1058 = vsel %vm1050, %v1041, %v1057
        %v1059 = vsel %vm1049, %v1056, %v1058
        %v1060 = vsel %vm1048, %v1038, %v1041
        %v1061 = vsel %vm1051, %v1047, 1326507024
        %v1062 = vsel %vm1050, %v1044, %v1061
        %v1063 = vsel %vm1049, %v1060, %v1062
        %v1064 = vshll.u32 %v1024, 8
        %v1065 = vmul.u32.u64.compose %v1064, %v1063
        %v1066 = vextract.low.u32 %v1065
        %v1067 = vextract.high.u32 %v1065
        %v1068 = vmul.u32.u64.compose %v1064, %v1059
        %v1069 = vextract.low.u32 %v1068
        %v1070 = vextract.high.u32 %v1068
        %v1071 = vmul.u32 %v1064, %v1055
        %v1072 = vadd.s32 %v1067, %v1069
        %vm1073 = vc.u32 %v1067, %v1069
        %v1074 = vadd.s32 %v1070, 1
        %v1075 = vsel %vm1073, %v1074, %v1070
        %v1076 = vadd.s32 %v1071, %v1075
        %v1077 = vadd.s32 %v1076, 536870912
        %v1078 = vshrl.u32 %v1077, 30
        %v1079 = vshll.u32 %v1078, 30
        %v1080 = vsub.s32 %v1076, %v1079
        %vm1081 = vcmp.lt.s32.totalorder %v1080, 0
        %v1082 = vsub.s32 0, %v1080
        %v1083 = vsel %vm1081, %v1082, %v1080
        %v1084 = vclz %v1083
        %v1085 = vsub.s32 %v1084, 2
        %vm1086 = vcmp.gt.s32.totalorder 0, %v1085
        %v1087 = vsel %vm1086, 0, %v1085
        %v1088 = vsub.s32 32, %v1087
        %v1089 = vshll.u32 %v1080, %v1087
        %v1090 = vshrl.u32 %v1072, %v1088
        %v1091 = vor.u32 %v1089, %v1090
        %v1092 = vsub.s32 4294967266, %v1087
        %v1093 = vadd.s32 %v1092, 127
        %v1094 = vshll.u32 %v1093, 23
        %v1095 = vor.u32 4788187, %v1094
        %v1096 = vand.u32 2147483647, %v1095
        %v1098 = vcvt.s32.f32 %v1091
        %v1099 = vmul.f32 %v1098, %v1096
        %v1100 = vxor.u32 %v1099, 2147483648
        %v1101 = vsel %vm1018, %v1100, %v1099
        %v1102 = vsub.s32 4, %v1078
        %v1103 = vsel %vm1018, %v1102, %v1078
        %v1104 = vsel %vm1017, %v1001, %v1101
        %v1105 = vsel %vm1017, 0, %v1103
        %v1106 = vcosq.f32.pop %v1104
        %v1107 = vsinq.f32.pop %v1104
        %vm1108 = vweird.f32 %v1001
        %v1109 = vadd.s32 %v1105, 3
        %v1110 = vand.u32 %v1109, 3
        %vm1111 = vcmp.lt.s32.totalorder %v1110, 2
        %vm1112 = vcmp.eq.s32.totalorder %v1110, 0
        %v1113 = vxor.u32 %v1107, 2147483648
        %v1114 = vsel %vm1112, %v1106, %v1113
        %vm1115 = vcmp.eq.s32.totalorder %v1110, 2
        %v1116 = vxor.u32 %v1106, 2147483648
        %v1117 = vsel %vm1115, %v1116, %v1107
        %v1118 = vsel %vm1111, %v1114, %v1117
        %v1119 = vsel %vm1108, nan, %v1118
        %v1120 = vand.u32 2147483647, %v1008
        %vm1121 = vcmp.le.f32.partialorder %v1120, 0.7853982
        %vm1122 = vcmp.lt.s32.totalorder %v1008, 0
        %v1123 = vand.u32 %v1008, 2139095040
        %v1124 = vshrl.u32 %v1123, 23
        %v1125 = vsub.s32 %v1124, 127
        %v1126 = vand.u32 2147483647, %v1008
        %v1127 = vand.u32 %v1126, 8388607
        %v1128 = vor.u32 %v1127, 8388608
        %v1129 = vsub.s32 0, %v1128
        %v1130 = vadd.s32 %v1125, 1
        %vm1131 = vcmp.gt.s32.totalorder %v1130, 0
        %v1132 = vsel %vm1131, %v1130, 0
        %v1133 = vshrl.u32 %v1132, 5
        %v1134 = vand.u32 %v1132, 31
        %v1135 = vsub.s32 32, %v1134
        %v1136 = vshrl.u32 683565275, %v1135
        %v1137 = vshll.u32 683565275, %v1134
        %v1138 = vshrl.u32 2475754826, %v1135
        %v1139 = vor.u32 %v1137, %v1138
        %v1140 = vshll.u32 2475754826, %v1134
        %v1141 = vshrl.u32 2131351028, %v1135
        %v1142 = vor.u32 %v1140, %v1141
        %v1143 = vshll.u32 2131351028, %v1134
        %v1144 = vshrl.u32 2102212464, %v1135
        %v1145 = vor.u32 %v1143, %v1144
        %v1146 = vshll.u32 2102212464, %v1134
        %v1147 = vshrl.u32 920167782, %v1135
        %v1148 = vor.u32 %v1146, %v1147
        %v1149 = vshll.u32 920167782, %v1134
        %v1150 = vshrl.u32 1326507024, %v1135
        %v1151 = vor.u32 %v1149, %v1150
        %vm1152 = vcmp.lt.s32.totalorder %v1133, 1
        %vm1153 = vcmp.lt.s32.totalorder %v1133, 2
        %vm1154 = vcmp.lt.s32.totalorder %v1133, 3
        %vm1155 = vcmp.lt.s32.totalorder %v1133, 4
        %v1156 = vsel %vm1152, %v1136, %v1139
        %v1157 = vsel %vm1155, %v1145, 2102212464
        %v1158 = vsel %vm1154, %v1142, %v1157
        %v1159 = vsel %vm1153, %v1156, %v1158
        %v1160 = vsel %vm1152, %v1139, %v1142
        %v1161 = vsel %vm1155, %v1148, 920167782
        %v1162 = vsel %vm1154, %v1145, %v1161
        %v1163 = vsel %vm1153, %v1160, %v1162
        %v1164 = vsel %vm1152, %v1142, %v1145
        %v1165 = vsel %vm1155, %v1151, 1326507024
        %v1166 = vsel %vm1154, %v1148, %v1165
        %v1167 = vsel %vm1153, %v1164, %v1166
        %v1168 = vshll.u32 %v1128, 8
        %v1169 = vmul.u32.u64.compose %v1168, %v1167
        %v1170 = vextract.low.u32 %v1169
        %v1171 = vextract.high.u32 %v1169
        %v1172 = vmul.u32.u64.compose %v1168, %v1163
        %v1173 = vextract.low.u32 %v1172
        %v1174 = vextract.high.u32 %v1172
        %v1175 = vmul.u32 %v1168, %v1159
        %v1176 = vadd.s32 %v1171, %v1173
        %vm1177 = vc.u32 %v1171, %v1173
        %v1178 = vadd.s32 %v1174, 1
        %v1179 = vsel %vm1177, %v1178, %v1174
        %v1180 = vadd.s32 %v1175, %v1179
        %v1181 = vadd.s32 %v1180, 536870912
        %v1182 = vshrl.u32 %v1181, 30
        %v1183 = vshll.u32 %v1182, 30
        %v1184 = vsub.s32 %v1180, %v1183
        %vm1185 = vcmp.lt.s32.totalorder %v1184, 0
        %v1186 = vsub.s32 0, %v1184
        %v1187 = vsel %vm1185, %v1186, %v1184
        %v1188 = vclz %v1187
        %v1189 = vsub.s32 %v1188, 2
        %vm1190 = vcmp.gt.s32.totalorder 0, %v1189
        %v1191 = vsel %vm1190, 0, %v1189
        %v1192 = vsub.s32 32, %v1191
        %v1193 = vshll.u32 %v1184, %v1191
        %v1194 = vshrl.u32 %v1176, %v1192
        %v1195 = vor.u32 %v1193, %v1194
        %v1196 = vsub.s32 4294967266, %v1191
        %v1197 = vadd.s32 %v1196, 127
        %v1198 = vshll.u32 %v1197, 23
        %v1199 = vor.u32 4788187, %v1198
        %v1200 = vand.u32 2147483647, %v1199
        %v1202 = vcvt.s32.f32 %v1195
        %v1203 = vmul.f32 %v1202, %v1200
        %v1204 = vxor.u32 %v1203, 2147483648
        %v1205 = vsel %vm1122, %v1204, %v1203
        %v1206 = vsub.s32 4, %v1182
        %v1207 = vsel %vm1122, %v1206, %v1182
        %v1208 = vsel %vm1121, %v1008, %v1205
        %v1209 = vsel %vm1121, 0, %v1207
        %v1210 = vcosq.f32.pop %v1208
        %v1211 = vsinq.f32.pop %v1208
        %vm1212 = vweird.f32 %v1008
        %v1213 = vadd.s32 %v1209, 3
        %v1214 = vand.u32 %v1213, 3
        %vm1215 = vcmp.lt.s32.totalorder %v1214, 2
        %vm1216 = vcmp.eq.s32.totalorder %v1214, 0
        %v1217 = vxor.u32 %v1211, 2147483648
        %v1218 = vsel %vm1216, %v1210, %v1217
        %vm1219 = vcmp.eq.s32.totalorder %v1214, 2
        %v1220 = vxor.u32 %v1210, 2147483648
        %v1221 = vsel %vm1219, %v1220, %v1211
        %v1222 = vsel %vm1215, %v1218, %v1221
        %v1223 = vsel %vm1212, nan, %v1222
        %1225 = vset.pattern.permute.xlu0 0
        %1226 = vperm.xlu0 %1225, %v803
        %v1227 = vpop.permute.xlu0 %1226
        %v1229 = vmul.f32 %v1223, %v1227
        %v1230 = vand.u32 2147483647, %v1015
        %vm1231 = vcmp.le.f32.partialorder %v1230, 0.7853982
        %vm1232 = vcmp.lt.s32.totalorder %v1015, 0
        %v1233 = vand.u32 %v1015, 2139095040
        %v1234 = vshrl.u32 %v1233, 23
        %v1235 = vsub.s32 %v1234, 127
        %v1236 = vand.u32 2147483647, %v1015
        %v1237 = vand.u32 %v1236, 8388607
        %v1238 = vor.u32 %v1237, 8388608
        %v1239 = vsub.s32 0, %v1238
        %v1240 = vadd.s32 %v1235, 1
        %vm1241 = vcmp.gt.s32.totalorder %v1240, 0
        %v1242 = vsel %vm1241, %v1240, 0
        %v1243 = vshrl.u32 %v1242, 5
        %v1244 = vand.u32 %v1242, 31
        %v1245 = vsub.s32 32, %v1244
        %v1246 = vshrl.u32 683565275, %v1245
        %v1247 = vshll.u32 683565275, %v1244
        %v1248 = vshrl.u32 2475754826, %v1245
        %v1249 = vor.u32 %v1247, %v1248
        %v1250 = vshll.u32 2475754826, %v1244
        %v1251 = vshrl.u32 2131351028, %v1245
        %v1252 = vor.u32 %v1250, %v1251
        %v1253 = vshll.u32 2131351028, %v1244
        %v1254 = vshrl.u32 2102212464, %v1245
        %v1255 = vor.u32 %v1253, %v1254
        %v1256 = vshll.u32 2102212464, %v1244
        %v1257 = vshrl.u32 920167782, %v1245
        %v1258 = vor.u32 %v1256, %v1257
        %v1259 = vshll.u32 920167782, %v1244
        %v1260 = vshrl.u32 1326507024, %v1245
        %v1261 = vor.u32 %v1259, %v1260
        %vm1262 = vcmp.lt.s32.totalorder %v1243, 1
        %vm1263 = vcmp.lt.s32.totalorder %v1243, 2
        %vm1264 = vcmp.lt.s32.totalorder %v1243, 3
        %vm1265 = vcmp.lt.s32.totalorder %v1243, 4
        %v1266 = vsel %vm1262, %v1246, %v1249
        %v1267 = vsel %vm1265, %v1255, 2102212464
        %v1268 = vsel %vm1264, %v1252, %v1267
        %v1269 = vsel %vm1263, %v1266, %v1268
        %v1270 = vsel %vm1262, %v1249, %v1252
        %v1271 = vsel %vm1265, %v1258, 920167782
        %v1272 = vsel %vm1264, %v1255, %v1271
        %v1273 = vsel %vm1263, %v1270, %v1272
        %v1274 = vsel %vm1262, %v1252, %v1255
        %v1275 = vsel %vm1265, %v1261, 1326507024
        %v1276 = vsel %vm1264, %v1258, %v1275
        %v1277 = vsel %vm1263, %v1274, %v1276
        %v1278 = vshll.u32 %v1238, 8
        %v1279 = vmul.u32.u64.compose %v1278, %v1277
        %v1280 = vextract.low.u32 %v1279
        %v1281 = vextract.high.u32 %v1279
        %v1282 = vmul.u32.u64.compose %v1278, %v1273
        %v1283 = vextract.low.u32 %v1282
        %v1284 = vextract.high.u32 %v1282
        %v1285 = vmul.u32 %v1278, %v1269
        %v1286 = vadd.s32 %v1281, %v1283
        %vm1287 = vc.u32 %v1281, %v1283
        %v1288 = vadd.s32 %v1284, 1
        %v1289 = vsel %vm1287, %v1288, %v1284
        %v1290 = vadd.s32 %v1285, %v1289
        %v1291 = vadd.s32 %v1290, 536870912
        %v1292 = vshrl.u32 %v1291, 30
        %v1293 = vshll.u32 %v1292, 30
        %v1294 = vsub.s32 %v1290, %v1293
        %vm1295 = vcmp.lt.s32.totalorder %v1294, 0
        %v1296 = vsub.s32 0, %v1294
        %v1297 = vsel %vm1295, %v1296, %v1294
        %v1298 = vclz %v1297
        %v1299 = vsub.s32 %v1298, 2
        %vm1300 = vcmp.gt.s32.totalorder 0, %v1299
        %v1301 = vsel %vm1300, 0, %v1299
        %v1302 = vsub.s32 32, %v1301
        %v1303 = vshll.u32 %v1294, %v1301
        %v1304 = vshrl.u32 %v1286, %v1302
        %v1305 = vor.u32 %v1303, %v1304
        %v1306 = vsub.s32 4294967266, %v1301
        %v1307 = vadd.s32 %v1306, 127
        %v1308 = vshll.u32 %v1307, 23
        %v1309 = vor.u32 4788187, %v1308
        %v1310 = vand.u32 2147483647, %v1309
        %v1312 = vcvt.s32.f32 %v1305
        %v1313 = vmul.f32 %v1312, %v1310
        %v1314 = vxor.u32 %v1313, 2147483648
        %v1315 = vsel %vm1232, %v1314, %v1313
        %v1316 = vsub.s32 4, %v1292
        %v1317 = vsel %vm1232, %v1316, %v1292
        %v1318 = vsel %vm1231, %v1015, %v1315
        %v1319 = vsel %vm1231, 0, %v1317
        %v1320 = vcosq.f32.pop %v1318
        %v1321 = vsinq.f32.pop %v1318
        %vm1322 = vweird.f32 %v1015
        %v1323 = vadd.s32 %v1319, 3
        %v1324 = vand.u32 %v1323, 3
        %vm1325 = vcmp.lt.s32.totalorder %v1324, 2
        %vm1326 = vcmp.eq.s32.totalorder %v1324, 0
        %v1327 = vxor.u32 %v1321, 2147483648
        %v1328 = vsel %vm1326, %v1320, %v1327
        %vm1329 = vcmp.eq.s32.totalorder %v1324, 2
        %v1330 = vxor.u32 %v1320, 2147483648
        %v1331 = vsel %vm1329, %v1330, %v1321
        %v1332 = vsel %vm1325, %v1328, %v1331
        %v1333 = vsel %vm1322, nan, %v1332
        %1335 = vset.pattern.permute.xlu0 0
        %1336 = vperm.xlu0 %1335, %v802
        %v1337 = vpop.permute.xlu0 %1336
        %v1339 = vmul.f32 %v1333, %v1337
        %v1340 = vadd.f32 %v1229, %v1339
        %v1341 = vsub.f32 %v1119, %v1340
        %v1342 = vand.u32 2147483647, %v1001
        %vm1343 = vcmp.le.f32.partialorder %v1342, 0.7853982
        %vm1344 = vcmp.lt.s32.totalorder %v1001, 0
        %v1345 = vand.u32 %v1001, 2139095040
        %v1346 = vshrl.u32 %v1345, 23
        %v1347 = vsub.s32 %v1346, 127
        %v1348 = vand.u32 2147483647, %v1001
        %v1349 = vand.u32 %v1348, 8388607
        %v1350 = vor.u32 %v1349, 8388608
        %v1351 = vsub.s32 0, %v1350
        %v1352 = vadd.s32 %v1347, 1
        %vm1353 = vcmp.gt.s32.totalorder %v1352, 0
        %v1354 = vsel %vm1353, %v1352, 0
        %v1355 = vshrl.u32 %v1354, 5
        %v1356 = vand.u32 %v1354, 31
        %v1357 = vsub.s32 32, %v1356
        %v1358 = vshrl.u32 683565275, %v1357
        %v1359 = vshll.u32 683565275, %v1356
        %v1360 = vshrl.u32 2475754826, %v1357
        %v1361 = vor.u32 %v1359, %v1360
        %v1362 = vshll.u32 2475754826, %v1356
        %v1363 = vshrl.u32 2131351028, %v1357
        %v1364 = vor.u32 %v1362, %v1363
        %v1365 = vshll.u32 2131351028, %v1356
        %v1366 = vshrl.u32 2102212464, %v1357
        %v1367 = vor.u32 %v1365, %v1366
        %v1368 = vshll.u32 2102212464, %v1356
        %v1369 = vshrl.u32 920167782, %v1357
        %v1370 = vor.u32 %v1368, %v1369
        %v1371 = vshll.u32 920167782, %v1356
        %v1372 = vshrl.u32 1326507024, %v1357
        %v1373 = vor.u32 %v1371, %v1372
        %vm1374 = vcmp.lt.s32.totalorder %v1355, 1
        %vm1375 = vcmp.lt.s32.totalorder %v1355, 2
        %vm1376 = vcmp.lt.s32.totalorder %v1355, 3
        %vm1377 = vcmp.lt.s32.totalorder %v1355, 4
        %v1378 = vsel %vm1374, %v1358, %v1361
        %v1379 = vsel %vm1377, %v1367, 2102212464
        %v1380 = vsel %vm1376, %v1364, %v1379
        %v1381 = vsel %vm1375, %v1378, %v1380
        %v1382 = vsel %vm1374, %v1361, %v1364
        %v1383 = vsel %vm1377, %v1370, 920167782
        %v1384 = vsel %vm1376, %v1367, %v1383
        %v1385 = vsel %vm1375, %v1382, %v1384
        %v1386 = vsel %vm1374, %v1364, %v1367
        %v1387 = vsel %vm1377, %v1373, 1326507024
        %v1388 = vsel %vm1376, %v1370, %v1387
        %v1389 = vsel %vm1375, %v1386, %v1388
        %v1390 = vshll.u32 %v1350, 8
        %v1391 = vmul.u32.u64.compose %v1390, %v1389
        %v1392 = vextract.low.u32 %v1391
        %v1393 = vextract.high.u32 %v1391
        %v1394 = vmul.u32.u64.compose %v1390, %v1385
        %v1395 = vextract.low.u32 %v1394
        %v1396 = vextract.high.u32 %v1394
        %v1397 = vmul.u32 %v1390, %v1381
        %v1398 = vadd.s32 %v1393, %v1395
        %vm1399 = vc.u32 %v1393, %v1395
        %v1400 = vadd.s32 %v1396, 1
        %v1401 = vsel %vm1399, %v1400, %v1396
        %v1402 = vadd.s32 %v1397, %v1401
        %v1403 = vadd.s32 %v1402, 536870912
        %v1404 = vshrl.u32 %v1403, 30
        %v1405 = vshll.u32 %v1404, 30
        %v1406 = vsub.s32 %v1402, %v1405
        %vm1407 = vcmp.lt.s32.totalorder %v1406, 0
        %v1408 = vsub.s32 0, %v1406
        %v1409 = vsel %vm1407, %v1408, %v1406
        %v1410 = vclz %v1409
        %v1411 = vsub.s32 %v1410, 2
        %vm1412 = vcmp.gt.s32.totalorder 0, %v1411
        %v1413 = vsel %vm1412, 0, %v1411
        %v1414 = vsub.s32 32, %v1413
        %v1415 = vshll.u32 %v1406, %v1413
        %v1416 = vshrl.u32 %v1398, %v1414
        %v1417 = vor.u32 %v1415, %v1416
        %v1418 = vsub.s32 4294967266, %v1413
        %v1419 = vadd.s32 %v1418, 127
        %v1420 = vshll.u32 %v1419, 23
        %v1421 = vor.u32 4788187, %v1420
        %v1422 = vand.u32 2147483647, %v1421
        %v1424 = vcvt.s32.f32 %v1417
        %v1425 = vmul.f32 %v1424, %v1422
        %v1426 = vxor.u32 %v1425, 2147483648
        %v1427 = vsel %vm1344, %v1426, %v1425
        %v1428 = vsub.s32 4, %v1404
        %v1429 = vsel %vm1344, %v1428, %v1404
        %v1430 = vsel %vm1343, %v1001, %v1427
        %v1431 = vsel %vm1343, 0, %v1429
        %v1432 = vcosq.f32.pop %v1430
        %v1433 = vsinq.f32.pop %v1430
        %vm1434 = vweird.f32 %v1001
        %v1435 = vand.u32 %v1431, 3
        %vm1436 = vcmp.lt.s32.totalorder %v1435, 2
        %vm1437 = vcmp.eq.s32.totalorder %v1435, 0
        %v1438 = vxor.u32 %v1433, 2147483648
        %v1439 = vsel %vm1437, %v1432, %v1438
        %vm1440 = vcmp.eq.s32.totalorder %v1435, 2
        %v1441 = vxor.u32 %v1432, 2147483648
        %v1442 = vsel %vm1440, %v1441, %v1433
        %v1443 = vsel %vm1436, %v1439, %v1442
        %v1444 = vsel %vm1434, nan, %v1443
        %v1445 = vand.u32 2147483647, %v1008
        %vm1446 = vcmp.le.f32.partialorder %v1445, 0.7853982
        %vm1447 = vcmp.lt.s32.totalorder %v1008, 0
        %v1448 = vand.u32 %v1008, 2139095040
        %v1449 = vshrl.u32 %v1448, 23
        %v1450 = vsub.s32 %v1449, 127
        %v1451 = vand.u32 2147483647, %v1008
        %v1452 = vand.u32 %v1451, 8388607
        %v1453 = vor.u32 %v1452, 8388608
        %v1454 = vsub.s32 0, %v1453
        %v1455 = vadd.s32 %v1450, 1
        %vm1456 = vcmp.gt.s32.totalorder %v1455, 0
        %v1457 = vsel %vm1456, %v1455, 0
        %v1458 = vshrl.u32 %v1457, 5
        %v1459 = vand.u32 %v1457, 31
        %v1460 = vsub.s32 32, %v1459
        %v1461 = vshrl.u32 683565275, %v1460
        %v1462 = vshll.u32 683565275, %v1459
        %v1463 = vshrl.u32 2475754826, %v1460
        %v1464 = vor.u32 %v1462, %v1463
        %v1465 = vshll.u32 2475754826, %v1459
        %v1466 = vshrl.u32 2131351028, %v1460
        %v1467 = vor.u32 %v1465, %v1466
        %v1468 = vshll.u32 2131351028, %v1459
        %v1469 = vshrl.u32 2102212464, %v1460
        %v1470 = vor.u32 %v1468, %v1469
        %v1471 = vshll.u32 2102212464, %v1459
        %v1472 = vshrl.u32 920167782, %v1460
        %v1473 = vor.u32 %v1471, %v1472
        %v1474 = vshll.u32 920167782, %v1459
        %v1475 = vshrl.u32 1326507024, %v1460
        %v1476 = vor.u32 %v1474, %v1475
        %vm1477 = vcmp.lt.s32.totalorder %v1458, 1
        %vm1478 = vcmp.lt.s32.totalorder %v1458, 2
        %vm1479 = vcmp.lt.s32.totalorder %v1458, 3
        %vm1480 = vcmp.lt.s32.totalorder %v1458, 4
        %v1481 = vsel %vm1477, %v1461, %v1464
        %v1482 = vsel %vm1480, %v1470, 2102212464
        %v1483 = vsel %vm1479, %v1467, %v1482
        %v1484 = vsel %vm1478, %v1481, %v1483
        %v1485 = vsel %vm1477, %v1464, %v1467
        %v1486 = vsel %vm1480, %v1473, 920167782
        %v1487 = vsel %vm1479, %v1470, %v1486
        %v1488 = vsel %vm1478, %v1485, %v1487
        %v1489 = vsel %vm1477, %v1467, %v1470
        %v1490 = vsel %vm1480, %v1476, 1326507024
        %v1491 = vsel %vm1479, %v1473, %v1490
        %v1492 = vsel %vm1478, %v1489, %v1491
        %v1493 = vshll.u32 %v1453, 8
        %v1494 = vmul.u32.u64.compose %v1493, %v1492
        %v1495 = vextract.low.u32 %v1494
        %v1496 = vextract.high.u32 %v1494
        %v1497 = vmul.u32.u64.compose %v1493, %v1488
        %v1498 = vextract.low.u32 %v1497
        %v1499 = vextract.high.u32 %v1497
        %v1500 = vmul.u32 %v1493, %v1484
        %v1501 = vadd.s32 %v1496, %v1498
        %vm1502 = vc.u32 %v1496, %v1498
        %v1503 = vadd.s32 %v1499, 1
        %v1504 = vsel %vm1502, %v1503, %v1499
        %v1505 = vadd.s32 %v1500, %v1504
        %v1506 = vadd.s32 %v1505, 536870912
        %v1507 = vshrl.u32 %v1506, 30
        %v1508 = vshll.u32 %v1507, 30
        %v1509 = vsub.s32 %v1505, %v1508
        %vm1510 = vcmp.lt.s32.totalorder %v1509, 0
        %v1511 = vsub.s32 0, %v1509
        %v1512 = vsel %vm1510, %v1511, %v1509
        %v1513 = vclz %v1512
        %v1514 = vsub.s32 %v1513, 2
        %vm1515 = vcmp.gt.s32.totalorder 0, %v1514
        %v1516 = vsel %vm1515, 0, %v1514
        %v1517 = vsub.s32 32, %v1516
        %v1518 = vshll.u32 %v1509, %v1516
        %v1519 = vshrl.u32 %v1501, %v1517
        %v1520 = vor.u32 %v1518, %v1519
        %v1521 = vsub.s32 4294967266, %v1516
        %v1522 = vadd.s32 %v1521, 127
        %v1523 = vshll.u32 %v1522, 23
        %v1524 = vor.u32 4788187, %v1523
        %v1525 = vand.u32 2147483647, %v1524
        %v1527 = vcvt.s32.f32 %v1520
        %v1528 = vmul.f32 %v1527, %v1525
        %v1529 = vxor.u32 %v1528, 2147483648
        %v1530 = vsel %vm1447, %v1529, %v1528
        %v1531 = vsub.s32 4, %v1507
        %v1532 = vsel %vm1447, %v1531, %v1507
        %v1533 = vsel %vm1446, %v1008, %v1530
        %v1534 = vsel %vm1446, 0, %v1532
        %v1535 = vcosq.f32.pop %v1533
        %v1536 = vsinq.f32.pop %v1533
        %vm1537 = vweird.f32 %v1008
        %v1538 = vand.u32 %v1534, 3
        %vm1539 = vcmp.lt.s32.totalorder %v1538, 2
        %vm1540 = vcmp.eq.s32.totalorder %v1538, 0
        %v1541 = vxor.u32 %v1536, 2147483648
        %v1542 = vsel %vm1540, %v1535, %v1541
        %vm1543 = vcmp.eq.s32.totalorder %v1538, 2
        %v1544 = vxor.u32 %v1535, 2147483648
        %v1545 = vsel %vm1543, %v1544, %v1536
        %v1546 = vsel %vm1539, %v1542, %v1545
        %v1547 = vsel %vm1537, nan, %v1546
        %v1548 = vmul.f32 %v1547, %v1227
        %v1549 = vand.u32 2147483647, %v1015
        %vm1550 = vcmp.le.f32.partialorder %v1549, 0.7853982
        %vm1551 = vcmp.lt.s32.totalorder %v1015, 0
        %v1552 = vand.u32 %v1015, 2139095040
        %v1553 = vshrl.u32 %v1552, 23
        %v1554 = vsub.s32 %v1553, 127
        %v1555 = vand.u32 2147483647, %v1015
        %v1556 = vand.u32 %v1555, 8388607
        %v1557 = vor.u32 %v1556, 8388608
        %v1558 = vsub.s32 0, %v1557
        %v1559 = vadd.s32 %v1554, 1
        %vm1560 = vcmp.gt.s32.totalorder %v1559, 0
        %v1561 = vsel %vm1560, %v1559, 0
        %v1562 = vshrl.u32 %v1561, 5
        %v1563 = vand.u32 %v1561, 31
        %v1564 = vsub.s32 32, %v1563
        %v1565 = vshrl.u32 683565275, %v1564
        %v1566 = vshll.u32 683565275, %v1563
        %v1567 = vshrl.u32 2475754826, %v1564
        %v1568 = vor.u32 %v1566, %v1567
        %v1569 = vshll.u32 2475754826, %v1563
        %v1570 = vshrl.u32 2131351028, %v1564
        %v1571 = vor.u32 %v1569, %v1570
        %v1572 = vshll.u32 2131351028, %v1563
        %v1573 = vshrl.u32 2102212464, %v1564
        %v1574 = vor.u32 %v1572, %v1573
        %v1575 = vshll.u32 2102212464, %v1563
        %v1576 = vshrl.u32 920167782, %v1564
        %v1577 = vor.u32 %v1575, %v1576
        %v1578 = vshll.u32 920167782, %v1563
        %v1579 = vshrl.u32 1326507024, %v1564
        %v1580 = vor.u32 %v1578, %v1579
        %vm1581 = vcmp.lt.s32.totalorder %v1562, 1
        %vm1582 = vcmp.lt.s32.totalorder %v1562, 2
        %vm1583 = vcmp.lt.s32.totalorder %v1562, 3
        %vm1584 = vcmp.lt.s32.totalorder %v1562, 4
        %v1585 = vsel %vm1581, %v1565, %v1568
        %v1586 = vsel %vm1584, %v1574, 2102212464
        %v1587 = vsel %vm1583, %v1571, %v1586
        %v1588 = vsel %vm1582, %v1585, %v1587
        %v1589 = vsel %vm1581, %v1568, %v1571
        %v1590 = vsel %vm1584, %v1577, 920167782
        %v1591 = vsel %vm1583, %v1574, %v1590
        %v1592 = vsel %vm1582, %v1589, %v1591
        %v1593 = vsel %vm1581, %v1571, %v1574
        %v1594 = vsel %vm1584, %v1580, 1326507024
        %v1595 = vsel %vm1583, %v1577, %v1594
        %v1596 = vsel %vm1582, %v1593, %v1595
        %v1597 = vshll.u32 %v1557, 8
        %v1598 = vmul.u32.u64.compose %v1597, %v1596
        %v1599 = vextract.low.u32 %v1598
        %v1600 = vextract.high.u32 %v1598
        %v1601 = vmul.u32.u64.compose %v1597, %v1592
        %v1602 = vextract.low.u32 %v1601
        %v1603 = vextract.high.u32 %v1601
        %v1604 = vmul.u32 %v1597, %v1588
        %v1605 = vadd.s32 %v1600, %v1602
        %vm1606 = vc.u32 %v1600, %v1602
        %v1607 = vadd.s32 %v1603, 1
        %v1608 = vsel %vm1606, %v1607, %v1603
        %v1609 = vadd.s32 %v1604, %v1608
        %v1610 = vadd.s32 %v1609, 536870912
        %v1611 = vshrl.u32 %v1610, 30
        %v1612 = vshll.u32 %v1611, 30
        %v1613 = vsub.s32 %v1609, %v1612
        %vm1614 = vcmp.lt.s32.totalorder %v1613, 0
        %v1615 = vsub.s32 0, %v1613
        %v1616 = vsel %vm1614, %v1615, %v1613
        %v1617 = vclz %v1616
        %v1618 = vsub.s32 %v1617, 2
        %vm1619 = vcmp.gt.s32.totalorder 0, %v1618
        %v1620 = vsel %vm1619, 0, %v1618
        %v1621 = vsub.s32 32, %v1620
        %v1622 = vshll.u32 %v1613, %v1620
        %v1623 = vshrl.u32 %v1605, %v1621
        %v1624 = vor.u32 %v1622, %v1623
        %v1625 = vsub.s32 4294967266, %v1620
        %v1626 = vadd.s32 %v1625, 127
        %v1627 = vshll.u32 %v1626, 23
        %v1628 = vor.u32 4788187, %v1627
        %v1629 = vand.u32 2147483647, %v1628
        %v1631 = vcvt.s32.f32 %v1624
        %v1632 = vmul.f32 %v1631, %v1629
        %v1633 = vxor.u32 %v1632, 2147483648
        %v1634 = vsel %vm1551, %v1633, %v1632
        %v1635 = vsub.s32 4, %v1611
        %v1636 = vsel %vm1551, %v1635, %v1611
        %v1637 = vsel %vm1550, %v1015, %v1634
        %v1638 = vsel %vm1550, 0, %v1636
        %v1639 = vcosq.f32.pop %v1637
        %v1640 = vsinq.f32.pop %v1637
        %vm1641 = vweird.f32 %v1015
        %v1642 = vand.u32 %v1638, 3
        %vm1643 = vcmp.lt.s32.totalorder %v1642, 2
        %vm1644 = vcmp.eq.s32.totalorder %v1642, 0
        %v1645 = vxor.u32 %v1640, 2147483648
        %v1646 = vsel %vm1644, %v1639, %v1645
        %vm1647 = vcmp.eq.s32.totalorder %v1642, 2
        %v1648 = vxor.u32 %v1639, 2147483648
        %v1649 = vsel %vm1647, %v1648, %v1640
        %v1650 = vsel %vm1643, %v1646, %v1649
        %v1651 = vsel %vm1641, nan, %v1650
        %v1652 = vmul.f32 %v1651, %v1337
        %v1653 = vadd.f32 %v1548, %v1652
        %v1654 = vsub.f32 %v1444, %v1653
        %v1655 = vmul.f32 %v895, %v1227
        %v1656 = vmul.f32 %v968, %v1337
        %v1657 = vadd.f32 %v1655, %v1656
        %1659 = vrot.lane.b32.xlu0 %v1657, 96
        %v1660 = vpop.permute.xlu0 %1659
        %v1662 = vadd.f32 %v1341, %v1660
        %1663 = vst.msk [vmem:[%s449] sm:$0xff] %vm461, %v1662
        %1664 = vrot.lane.b32.xlu0 %v1657, 80
        %v1665 = vpop.permute.xlu0 %1664
        %v1667 = vadd.f32 %v1654, %v1665
        %1669 = vrot.lane.b32.xlu0 %v1667, 16
        %v1670 = vpop.permute.xlu0 %1669
        %vm1672 = vcmask 261248
        %1673 = vst.msk [vmem:[%s449] sm:$0xff] %vm1672, %v1670
        %s1674 = sand.u32 %s283, 1
        %s1675 = scalar_lea.sflag [#allocation4], %s1674
        %s1676 = sand.u32 %s283, 1
        %s1677 = smul.addr %s1676, 8
        %s1678 = scalar_lea.vmem [#allocation8], %s1677
        // Predicated region
        $region77: #{tpu_custom_call.1} parent=63 // pred_check
          %p1679 = pneg %p293
        $region78: #{tpu_custom_call.1} parent=63 // pred_check_branch
          %1681 = sbr.rel (%p1679) target = $region80
        $region79: #{tpu_custom_call.1} parent=63 // pred_region
          %s1683 = ssub.s32 128, 128
          %1684 = vsyncadd %s1675, %s1683
          %s1685 = smul.addr %s29, 128
          %s1686 = scalar_lea.hbm %s11, %s1685
          %s1688 = sshll.u32 %s1678, 4
          %s1689 = int_to_ptr.vmem [resolvable:$true] %s1688
          %1691 = dma.vmem_to_hbm [thread:$0]  %s1689, 128, %s1686, %s1675
        $region80: #{tpu_custom_call.1} parent=63 // pred_fallthru
          _
      $region64: #{tpu_custom_call.1} parent=5 // pred_fallthru
        _
      %p1692 = scmp.le.s32.totalorder 2, %s24
      // Predicated region
      $region81: #{tpu_custom_call.1} parent=5 // pred_check
        %p1693 = pneg %p1692
      $region82: #{tpu_custom_call.1} parent=5 // pred_check_branch
        %1695 = sbr.rel (%p1693) target = $region84
      $region83: #{tpu_custom_call.1} parent=5 // pred_region
        %s1696 = ssub.s32 %s24, 2
        // Predicated region
        $region85: #{tpu_custom_call.1} parent=83 // pred_check
          %p1697 = pneg %p299
        $region86: #{tpu_custom_call.1} parent=83 // pred_check_branch
          %1699 = sbr.rel (%p1697) target = $region88
        $region87: #{tpu_custom_call.1} parent=83 // pred_region
          %s1700 = sand.u32 %s284, 1
          %s1701 = scalar_lea.sflag [#allocation4], %s1700
          %s1702 = sand.u32 %s284, 1
          %s1703 = smul.addr %s1702, 8
          %s1704 = scalar_lea.vmem [#allocation8], %s1703
          %1705 = dma.done %s1701, 128
        $region88: #{tpu_custom_call.1} parent=83 // pred_fallthru
          _
      $region84: #{tpu_custom_call.1} parent=5 // pred_fallthru
        _
    $region6: #{tpu_custom_call.1} parent=1 // loop_footer
      %s28 = sadd.s32 1, %s24
    $region7: #{tpu_custom_call.1} parent=1 // loop_footer_branch
      %23 = sbr.rel target = $region3
    $region8: #{tpu_custom_call.1} parent=1 // loop_exit
      _
    %1706 = vsyncpa [#allocation3], 1
    %s1707 = scalar_lea.sflag [#allocation3], 1
    %1708 = vsyncpa %s1707, 1
    %1709 = vsyncpa [#allocation6], 1
    %1710 = vsyncpa [#allocation4], 1
    %s1711 = scalar_lea.sflag [#allocation4], 1
    %1712 = vsyncpa %s1711, 1

</llo_original>
